<compile_context>
chip_gen: v5e
topology: v5e:2x2
jax: 0.10.0
libtpu: 0.0.40
codegen_flags: <defaults>
</compile_context>

<pallas_src>
import functools

import jax
import jax.numpy as jnp
from jax import lax
from jax.experimental import pallas as pl
from jax.experimental.pallas import tpu as pltpu

NUM_CLASSES = 6
NEG_RATIO = 3


def _multibox_loss_kernel(pred_loc_ref, pred_label_ref, gt_loc_ref, gt_label_ref,
                          loc_out_ref, cls_out_ref, npos_out_ref,
                          cem_row_ref, colT_ref,
                          *, num_anchors, num_classes, neg_ratio, tile):
    A_pad = cem_row_ref.shape[1]
    i = pl.program_id(1)

    gt = gt_label_ref[...][:, 0, :]                       # (1, Ap) int32
    pos = gt > 0
    pos_f = pos.astype(jnp.float32)

    # ---------------- per-batch-item setup (runs once, at i == 0) --------------
    @pl.when(i == 0)
    def _init():
        # localization loss: smooth-L1 (beta=1) summed over positive anchors.
        diff = pred_loc_ref[...] - gt_loc_ref[...]        # (1, 4, Ap)
        ad = jnp.abs(diff)
        sl1 = jnp.where(ad < 1.0, 0.5 * diff * diff, ad - 0.5)
        loc_sum = jnp.sum(sl1 * pos_f[:, None, :])

        # per-anchor cross entropy, unrolled over the tiny class axis so every
        # vector op stays lane-dense over anchors (no (B,A,C) one-hot/iota).
        lbl = pred_label_ref[...]                         # (1, C, Ap)
        m = lbl[:, 0, :]
        for c in range(1, num_classes):
            m = jnp.maximum(m, lbl[:, c, :])
        s = jnp.exp(lbl[:, 0, :] - m)
        for c in range(1, num_classes):
            s = s + jnp.exp(lbl[:, c, :] - m)
        tgt = jnp.where(gt == 0, lbl[:, 0, :], 0.0)
        for c in range(1, num_classes):
            tgt = jnp.where(gt == c, lbl[:, c, :], tgt)
        ce = jnp.log(s) + m - tgt                         # (1, Ap)

        # mined loss: positives -> 0 (torch convention), padded anchors -> -1
        # so they sort strictly after every real anchor and are never selected.
        lane = lax.broadcasted_iota(jnp.int32, (1, A_pad), 1)
        valid = lane < num_anchors
        cem = jnp.where(pos, 0.0, ce)
        cem = jnp.where(valid, cem, -1.0)

        cem_row_ref[...] = cem                            # lane layout (the "j" side)

        # column layout for the mining tiles: pack [cem, ce, pos] as columns of
        # one (Ap, 8) scratch via a single tile-friendly (8, Ap) transpose.
        row_id = lax.broadcasted_iota(jnp.int32, (8, A_pad), 0)
        cem8 = jnp.broadcast_to(cem, (8, A_pad))
        ce8 = jnp.broadcast_to(ce, (8, A_pad))
        pos8 = jnp.broadcast_to(pos_f, (8, A_pad))
        stack = jnp.where(row_id == 0, cem8,
                          jnp.where(row_id == 1, ce8,
                                    jnp.where(row_id == 2, pos8, 0.0)))
        colT_ref[...] = jnp.transpose(stack)              # (Ap, 8)

        loc_out_ref[...] = jnp.zeros_like(loc_out_ref) + loc_sum
        npos_out_ref[...] = jnp.zeros_like(npos_out_ref) + jnp.sum(pos_f)
        cls_out_ref[...] = jnp.zeros_like(cls_out_ref)

    # ---------------- hard-negative mining for this anchor tile ----------------
    start = pl.multiple_of(i * tile, tile)
    blk = colT_ref[pl.ds(start, tile), :]                 # (tile, 8), sublane slice
    li = blk[:, 0:1]                                      # mined loss of anchor i
    ce_i = blk[:, 1:2]                                    # raw CE of anchor i
    pos_i = blk[:, 2:3] > 0.5                             # positive mask of anchor i
    lj = cem_row_ref[...]                                 # (1, Ap) mined loss of anchor j

    i_idx = lax.broadcasted_iota(jnp.int32, (tile, A_pad), 0) + start
    j_idx = lax.broadcasted_iota(jnp.int32, (tile, A_pad), 1)
    # anchor j "beats" anchor i in a stable descending sort (index tie-break).
    beats = (lj > li) | ((lj == li) & (j_idx < i_idx))    # (tile, Ap)

    # row-sum on the (otherwise idle) MXU: 0/1 bf16 matmul, exact f32 counts.
    ones_col = jnp.ones((A_pad, 128), jnp.bfloat16)
    rank = jnp.dot(beats.astype(jnp.bfloat16), ones_col,
                   preferred_element_type=jnp.float32)[:, 0:1]   # (tile, 1)

    num_pos = jnp.sum(pos_f)
    num_neg = jnp.minimum(neg_ratio * num_pos, float(num_anchors - 1))
    neg_i = rank < num_neg                                # (tile, 1)

    sel = jnp.logical_or(pos_i, neg_i).astype(jnp.float32)
    cls_out_ref[...] = cls_out_ref[...] + jnp.sum(ce_i * sel)


def multibox_loss(pred_loc, pred_label, gt_loc, gt_label,
                  *, neg_ratio=NEG_RATIO, tile=128):
    B, A, _ = pred_loc.shape
    C = pred_label.shape[-1]
    assert tile % 128 == 0
    A_pad = pl.cdiv(A, tile) * tile
    n_tiles = A_pad // tile

    def to_anchor_last(x):
        return jnp.transpose(x, (0, 2, 1))

    def pad_lane(x):
        pad = A_pad - x.shape[-1]
        if pad == 0:
            return x
        cfg = [(0, 0)] * (x.ndim - 1) + [(0, pad)]
        return jnp.pad(x, cfg)

    ploc = pad_lane(to_anchor_last(pred_loc.astype(jnp.float32)))    # (B, 4, Ap)
    plab = pad_lane(to_anchor_last(pred_label.astype(jnp.float32)))  # (B, C, Ap)
    gloc = pad_lane(to_anchor_last(gt_loc.astype(jnp.float32)))      # (B, 4, Ap)
    glab = pad_lane(gt_label.astype(jnp.int32)[:, None, :])          # (B, 1, Ap)

    kernel = functools.partial(_multibox_loss_kernel, num_anchors=A,
                               num_classes=C, neg_ratio=neg_ratio, tile=tile)

    def batch_block(shape):
        return pl.BlockSpec(shape, lambda b, i: (b, 0, 0))

    loc_part, cls_part, npos_part = pl.pallas_call(
        kernel,
        grid=(B, n_tiles),
        in_specs=[
            batch_block((1, 4, A_pad)),
            batch_block((1, C, A_pad)),
            batch_block((1, 4, A_pad)),
            batch_block((1, 1, A_pad)),
        ],
        out_specs=(
            batch_block((1, 8, 128)),
            batch_block((1, 8, 128)),
            batch_block((1, 8, 128)),
        ),
        out_shape=(
            jax.ShapeDtypeStruct((B, 8, 128), jnp.float32),
            jax.ShapeDtypeStruct((B, 8, 128), jnp.float32),
            jax.ShapeDtypeStruct((B, 8, 128), jnp.float32),
        ),
        scratch_shapes=[
            pltpu.VMEM((1, A_pad), jnp.float32),   # mined CE, lane (row) layout
            pltpu.VMEM((A_pad, 8), jnp.float32),   # [cem, ce, pos] column layout
        ],
        compiler_params=pltpu.CompilerParams(
            dimension_semantics=("parallel", "arbitrary"),
            vmem_limit_bytes=32 * 1024 * 1024),
    )(ploc, plab, gloc, glab)

    # unnormalized per-batch partials -> total loss; clamp N>=1 to avoid 0/0.
    n = jnp.maximum(jnp.sum(npos_part[:, 0, 0]), 1.0)
    loc_loss = jnp.sum(loc_part[:, 0, 0]) / n
    cls_loss = jnp.sum(cls_part[:, 0, 0]) / n
    return loc_loss, cls_loss


def _reference_multibox_loss(pred_loc, pred_label, gt_loc, gt_label,
                             neg_ratio=NEG_RATIO):
    """Pure-JAX reference with the same rank/tie-break convention as torch."""
    B, A, C = pred_label.shape
    pos = gt_label > 0
    diff = pred_loc - gt_loc
    ad = jnp.abs(diff)
    sl1 = jnp.where(ad < 1.0, 0.5 * diff * diff, ad - 0.5)
    loc_loss = jnp.sum(sl1 * pos[:, :, None].astype(jnp.float32))

    ce = jax.nn.logsumexp(pred_label, axis=-1) - jnp.take_along_axis(
        pred_label, gt_label[:, :, None], axis=-1)[..., 0]
    ce_mined = jnp.where(pos, 0.0, ce)
    li = ce_mined[:, :, None]
    lj = ce_mined[:, None, :]
    i_iota = lax.broadcasted_iota(jnp.int32, (B, A, A), 1)
    j_iota = lax.broadcasted_iota(jnp.int32, (B, A, A), 2)
    rank = jnp.sum(((lj > li) | ((lj == li) & (j_iota < i_iota))).astype(jnp.int32), 2)
    num_pos = jnp.sum(pos.astype(jnp.int32), axis=1, keepdims=True)
    num_neg = jnp.minimum(neg_ratio * num_pos, A - 1)
    neg = rank < num_neg
    sel = jnp.logical_or(pos, neg).astype(jnp.float32)
    cls_loss = jnp.sum(ce * sel)
    n = jnp.sum(pos.astype(jnp.float32))
    return loc_loss / n, cls_loss / n


if __name__ == "__main__":
    B, A, C = 2, 200, NUM_CLASSES      # A=200 -> padded to 256 -> 2 mining tiles
    key = jax.random.PRNGKey(0)
    k1, k2, k3, k4 = jax.random.split(key, 4)
    pred_loc = jax.random.normal(k1, (B, A, 4), dtype=jnp.float32)
    pred_label = jax.random.normal(k2, (B, A, C), dtype=jnp.float32)
    gt_loc = jax.random.normal(k3, (B, A, 4), dtype=jnp.float32)
    gt_label = jax.random.randint(k4, (B, A), 0, C, dtype=jnp.int32)  # 0 = background

    loc_loss, cls_loss = multibox_loss(pred_loc, pred_label, gt_loc, gt_label)
    jax.block_until_ready((loc_loss, cls_loss))

    ref_loc, ref_cls = _reference_multibox_loss(pred_loc, pred_label, gt_loc, gt_label)
    assert jnp.allclose(loc_loss, ref_loc, rtol=1e-4, atol=1e-4), (loc_loss, ref_loc)
    assert jnp.allclose(cls_loss, ref_cls, rtol=1e-4, atol=1e-4), (cls_loss, ref_cls)

    print("KERNEL_OK")
</pallas_src>

<mosaic_0001>
module attributes {stable_mosaic.version = 11 : i64} {
  func.func @_multibox_loss_kernel(%arg0: i32, %arg1: i32, %arg2: memref<1x4x256xf32, #tpu.memory_space<vmem>>, %arg3: memref<1x6x256xf32, #tpu.memory_space<vmem>>, %arg4: memref<1x4x256xf32, #tpu.memory_space<vmem>>, %arg5: memref<1x1x256xi32, #tpu.memory_space<vmem>>, %arg6: memref<1x8x128xf32, #tpu.memory_space<vmem>>, %arg7: memref<1x8x128xf32, #tpu.memory_space<vmem>>, %arg8: memref<1x8x128xf32, #tpu.memory_space<vmem>>, %arg9: memref<1x256xf32, #tpu.memory_space<vmem>>, %arg10: memref<256x8xf32, #tpu.memory_space<vmem>>) attributes {dimension_semantics = [#tpu.dimension_semantics<parallel>, #tpu.dimension_semantics<arbitrary>], iteration_bounds = array<i64: 2, 2>, scalar_prefetch = 0 : i64, scratch_operands = 2 : i64, tpu.core_type = #tpu.core_type<tc>, window_params = [{transform_indices = @transform_0, window_bounds = array<i64: 1, 4, 256>}, {transform_indices = @transform_1, window_bounds = array<i64: 1, 6, 256>}, {transform_indices = @transform_2, window_bounds = array<i64: 1, 4, 256>}, {transform_indices = @transform_3, window_bounds = array<i64: 1, 1, 256>}, {transform_indices = @transform_4, window_bounds = array<i64: 1, 8, 128>}, {transform_indices = @transform_5, window_bounds = array<i64: 1, 8, 128>}, {transform_indices = @transform_6, window_bounds = array<i64: 1, 8, 128>}]} {
    %c0 = arith.constant 0 : index
    %c0_0 = arith.constant 0 : index
    %c0_1 = arith.constant 0 : index
    %0 = vector.load %arg5[%c0, %c0_0, %c0_1] : memref<1x1x256xi32, #tpu.memory_space<vmem>>, vector<1x1x256xi32>
    %1 = vector.shape_cast %0 : vector<1x1x256xi32> to vector<1x256xi32>
    %c0_i32 = arith.constant 0 : i32
    %2 = vector.broadcast %c0_i32 : i32 to vector<1x256xi32>
    %3 = arith.cmpi sgt, %1, %2 : vector<1x256xi32>
    %4 = arith.extui %3 : vector<1x256xi1> to vector<1x256xi32>
    %5 = arith.sitofp %4 : vector<1x256xi32> to vector<1x256xf32>
    %c0_i32_2 = arith.constant 0 : i32
    %6 = arith.cmpi eq, %arg1, %c0_i32_2 : i32
    %7 = arith.extui %6 : i1 to i32
    %c0_i32_3 = arith.constant 0 : i32
    %8 = arith.cmpi ne, %7, %c0_i32_3 : i32
    scf.if %8 {
      %c0_19 = arith.constant 0 : index
      %c0_20 = arith.constant 0 : index
      %c0_21 = arith.constant 0 : index
      %58 = vector.load %arg2[%c0_19, %c0_20, %c0_21] : memref<1x4x256xf32, #tpu.memory_space<vmem>>, vector<1x4x256xf32>
      %c0_22 = arith.constant 0 : index
      %c0_23 = arith.constant 0 : index
      %c0_24 = arith.constant 0 : index
      %59 = vector.load %arg4[%c0_22, %c0_23, %c0_24] : memref<1x4x256xf32, #tpu.memory_space<vmem>>, vector<1x4x256xf32>
      %60 = arith.subf %58, %59 : vector<1x4x256xf32>
      %61 = math.absf %60 : vector<1x4x256xf32>
      %cst_25 = arith.constant 1.000000e+00 : f32
      %62 = vector.broadcast %cst_25 : f32 to vector<1x4x256xf32>
      %63 = arith.cmpf olt, %61, %62 : vector<1x4x256xf32>
      %cst_26 = arith.constant 5.000000e-01 : f32
      %64 = vector.broadcast %cst_26 : f32 to vector<1x4x256xf32>
      %65 = arith.mulf %64, %60 : vector<1x4x256xf32>
      %66 = arith.mulf %65, %60 : vector<1x4x256xf32>
      %cst_27 = arith.constant 5.000000e-01 : f32
      %67 = vector.broadcast %cst_27 : f32 to vector<1x4x256xf32>
      %68 = arith.subf %61, %67 : vector<1x4x256xf32>
      %69 = arith.select %63, %66, %68 : vector<1x4x256xi1>, vector<1x4x256xf32>
      %70 = vector.shape_cast %5 : vector<1x256xf32> to vector<1x1x256xf32>
      %71 = vector.broadcast %70 : vector<1x1x256xf32> to vector<1x4x256xf32>
      %72 = arith.mulf %69, %71 : vector<1x4x256xf32>
      %73 = vector.shape_cast %72 : vector<1x4x256xf32> to vector<1x1x4x256xf32>
      %cst_28 = arith.constant dense<0.000000e+00> : vector<1xf32>
      %74 = vector.multi_reduction <add>, %73, %cst_28 [1, 2, 3] : vector<1x1x4x256xf32> to vector<1xf32>
      %75 = vector.shape_cast %74 : vector<1xf32> to vector<1x1x1x1xf32>
      %76 = vector.extract %75[0, 0, 0, 0] : f32 from vector<1x1x1x1xf32>
      %c0_29 = arith.constant 0 : index
      %c0_30 = arith.constant 0 : index
      %c0_31 = arith.constant 0 : index
      %77 = vector.load %arg3[%c0_29, %c0_30, %c0_31] : memref<1x6x256xf32, #tpu.memory_space<vmem>>, vector<1x6x256xf32>
      %78 = vector.extract_strided_slice %77 {offsets = [0, 0, 0], sizes = [1, 1, 256], strides = [1, 1, 1]} : vector<1x6x256xf32> to vector<1x1x256xf32>
      %79 = vector.shape_cast %78 : vector<1x1x256xf32> to vector<1x256xf32>
      %80 = vector.extract_strided_slice %77 {offsets = [0, 1, 0], sizes = [1, 1, 256], strides = [1, 1, 1]} : vector<1x6x256xf32> to vector<1x1x256xf32>
      %81 = vector.shape_cast %80 : vector<1x1x256xf32> to vector<1x256xf32>
      %82 = arith.maximumf %79, %81 : vector<1x256xf32>
      %83 = vector.extract_strided_slice %77 {offsets = [0, 2, 0], sizes = [1, 1, 256], strides = [1, 1, 1]} : vector<1x6x256xf32> to vector<1x1x256xf32>
      %84 = vector.shape_cast %83 : vector<1x1x256xf32> to vector<1x256xf32>
      %85 = arith.maximumf %82, %84 : vector<1x256xf32>
      %86 = vector.extract_strided_slice %77 {offsets = [0, 3, 0], sizes = [1, 1, 256], strides = [1, 1, 1]} : vector<1x6x256xf32> to vector<1x1x256xf32>
      %87 = vector.shape_cast %86 : vector<1x1x256xf32> to vector<1x256xf32>
      %88 = arith.maximumf %85, %87 : vector<1x256xf32>
      %89 = vector.extract_strided_slice %77 {offsets = [0, 4, 0], sizes = [1, 1, 256], strides = [1, 1, 1]} : vector<1x6x256xf32> to vector<1x1x256xf32>
      %90 = vector.shape_cast %89 : vector<1x1x256xf32> to vector<1x256xf32>
      %91 = arith.maximumf %88, %90 : vector<1x256xf32>
      %92 = vector.extract_strided_slice %77 {offsets = [0, 5, 0], sizes = [1, 1, 256], strides = [1, 1, 1]} : vector<1x6x256xf32> to vector<1x1x256xf32>
      %93 = vector.shape_cast %92 : vector<1x1x256xf32> to vector<1x256xf32>
      %94 = arith.maximumf %91, %93 : vector<1x256xf32>
      %95 = vector.extract_strided_slice %77 {offsets = [0, 0, 0], sizes = [1, 1, 256], strides = [1, 1, 1]} : vector<1x6x256xf32> to vector<1x1x256xf32>
      %96 = vector.shape_cast %95 : vector<1x1x256xf32> to vector<1x256xf32>
      %97 = arith.subf %96, %94 : vector<1x256xf32>
      %98 = math.exp %97 : vector<1x256xf32>
      %99 = vector.extract_strided_slice %77 {offsets = [0, 1, 0], sizes = [1, 1, 256], strides = [1, 1, 1]} : vector<1x6x256xf32> to vector<1x1x256xf32>
      %100 = vector.shape_cast %99 : vector<1x1x256xf32> to vector<1x256xf32>
      %101 = arith.subf %100, %94 : vector<1x256xf32>
      %102 = math.exp %101 : vector<1x256xf32>
      %103 = arith.addf %98, %102 : vector<1x256xf32>
      %104 = vector.extract_strided_slice %77 {offsets = [0, 2, 0], sizes = [1, 1, 256], strides = [1, 1, 1]} : vector<1x6x256xf32> to vector<1x1x256xf32>
      %105 = vector.shape_cast %104 : vector<1x1x256xf32> to vector<1x256xf32>
      %106 = arith.subf %105, %94 : vector<1x256xf32>
      %107 = math.exp %106 : vector<1x256xf32>
      %108 = arith.addf %103, %107 : vector<1x256xf32>
      %109 = vector.extract_strided_slice %77 {offsets = [0, 3, 0], sizes = [1, 1, 256], strides = [1, 1, 1]} : vector<1x6x256xf32> to vector<1x1x256xf32>
      %110 = vector.shape_cast %109 : vector<1x1x256xf32> to vector<1x256xf32>
      %111 = arith.subf %110, %94 : vector<1x256xf32>
      %112 = math.exp %111 : vector<1x256xf32>
      %113 = arith.addf %108, %112 : vector<1x256xf32>
      %114 = vector.extract_strided_slice %77 {offsets = [0, 4, 0], sizes = [1, 1, 256], strides = [1, 1, 1]} : vector<1x6x256xf32> to vector<1x1x256xf32>
      %115 = vector.shape_cast %114 : vector<1x1x256xf32> to vector<1x256xf32>
      %116 = arith.subf %115, %94 : vector<1x256xf32>
      %117 = math.exp %116 : vector<1x256xf32>
      %118 = arith.addf %113, %117 : vector<1x256xf32>
      %119 = vector.extract_strided_slice %77 {offsets = [0, 5, 0], sizes = [1, 1, 256], strides = [1, 1, 1]} : vector<1x6x256xf32> to vector<1x1x256xf32>
      %120 = vector.shape_cast %119 : vector<1x1x256xf32> to vector<1x256xf32>
      %121 = arith.subf %120, %94 : vector<1x256xf32>
      %122 = math.exp %121 : vector<1x256xf32>
      %123 = arith.addf %118, %122 : vector<1x256xf32>
      %c0_i32_32 = arith.constant 0 : i32
      %124 = vector.broadcast %c0_i32_32 : i32 to vector<1x256xi32>
      %125 = arith.cmpi eq, %1, %124 : vector<1x256xi32>
      %126 = vector.extract_strided_slice %77 {offsets = [0, 0, 0], sizes = [1, 1, 256], strides = [1, 1, 1]} : vector<1x6x256xf32> to vector<1x1x256xf32>
      %127 = vector.shape_cast %126 : vector<1x1x256xf32> to vector<1x256xf32>
      %cst_33 = arith.constant 0.000000e+00 : f32
      %128 = vector.broadcast %cst_33 : f32 to vector<1x256xf32>
      %129 = arith.select %125, %127, %128 : vector<1x256xi1>, vector<1x256xf32>
      %c1_i32 = arith.constant 1 : i32
      %130 = vector.broadcast %c1_i32 : i32 to vector<1x256xi32>
      %131 = arith.cmpi eq, %1, %130 : vector<1x256xi32>
      %132 = vector.extract_strided_slice %77 {offsets = [0, 1, 0], sizes = [1, 1, 256], strides = [1, 1, 1]} : vector<1x6x256xf32> to vector<1x1x256xf32>
      %133 = vector.shape_cast %132 : vector<1x1x256xf32> to vector<1x256xf32>
      %134 = arith.select %131, %133, %129 : vector<1x256xi1>, vector<1x256xf32>
      %c2_i32 = arith.constant 2 : i32
      %135 = vector.broadcast %c2_i32 : i32 to vector<1x256xi32>
      %136 = arith.cmpi eq, %1, %135 : vector<1x256xi32>
      %137 = vector.extract_strided_slice %77 {offsets = [0, 2, 0], sizes = [1, 1, 256], strides = [1, 1, 1]} : vector<1x6x256xf32> to vector<1x1x256xf32>
      %138 = vector.shape_cast %137 : vector<1x1x256xf32> to vector<1x256xf32>
      %139 = arith.select %136, %138, %134 : vector<1x256xi1>, vector<1x256xf32>
      %c3_i32 = arith.constant 3 : i32
      %140 = vector.broadcast %c3_i32 : i32 to vector<1x256xi32>
      %141 = arith.cmpi eq, %1, %140 : vector<1x256xi32>
      %142 = vector.extract_strided_slice %77 {offsets = [0, 3, 0], sizes = [1, 1, 256], strides = [1, 1, 1]} : vector<1x6x256xf32> to vector<1x1x256xf32>
      %143 = vector.shape_cast %142 : vector<1x1x256xf32> to vector<1x256xf32>
      %144 = arith.select %141, %143, %139 : vector<1x256xi1>, vector<1x256xf32>
      %c4_i32 = arith.constant 4 : i32
      %145 = vector.broadcast %c4_i32 : i32 to vector<1x256xi32>
      %146 = arith.cmpi eq, %1, %145 : vector<1x256xi32>
      %147 = vector.extract_strided_slice %77 {offsets = [0, 4, 0], sizes = [1, 1, 256], strides = [1, 1, 1]} : vector<1x6x256xf32> to vector<1x1x256xf32>
      %148 = vector.shape_cast %147 : vector<1x1x256xf32> to vector<1x256xf32>
      %149 = arith.select %146, %148, %144 : vector<1x256xi1>, vector<1x256xf32>
      %c5_i32 = arith.constant 5 : i32
      %150 = vector.broadcast %c5_i32 : i32 to vector<1x256xi32>
      %151 = arith.cmpi eq, %1, %150 : vector<1x256xi32>
      %152 = vector.extract_strided_slice %77 {offsets = [0, 5, 0], sizes = [1, 1, 256], strides = [1, 1, 1]} : vector<1x6x256xf32> to vector<1x1x256xf32>
      %153 = vector.shape_cast %152 : vector<1x1x256xf32> to vector<1x256xf32>
      %154 = arith.select %151, %153, %149 : vector<1x256xi1>, vector<1x256xf32>
      %155 = math.log %123 : vector<1x256xf32>
      %156 = arith.addf %155, %94 : vector<1x256xf32>
      %157 = arith.subf %156, %154 : vector<1x256xf32>
      %158 = tpu.iota {dimensions = array<i32: 1>} : vector<1x256xi32>
      %c200_i32 = arith.constant 200 : i32
      %159 = vector.broadcast %c200_i32 : i32 to vector<1x256xi32>
      %160 = arith.cmpi slt, %158, %159 : vector<1x256xi32>
      %cst_34 = arith.constant 0.000000e+00 : f32
      %161 = vector.broadcast %cst_34 : f32 to vector<1x256xf32>
      %162 = arith.select %3, %161, %157 : vector<1x256xi1>, vector<1x256xf32>
      %cst_35 = arith.constant -1.000000e+00 : f32
      %163 = vector.broadcast %cst_35 : f32 to vector<1x256xf32>
      %164 = arith.select %160, %162, %163 : vector<1x256xi1>, vector<1x256xf32>
      %c0_36 = arith.constant 0 : index
      %c0_37 = arith.constant 0 : index
      %165 = vector.load %arg9[%c0_36, %c0_37] : memref<1x256xf32, #tpu.memory_space<vmem>>, vector<1x256xf32>
      tpu.vector_store %arg9[%c0_36, %c0_37], %164 {strides = array<i32>} : memref<1x256xf32, #tpu.memory_space<vmem>>, vector<1x256xf32>,
      %166 = tpu.iota {dimensions = array<i32: 0>} : vector<8x256xi32>
      %167 = vector.shape_cast %164 : vector<1x256xf32> to vector<1x256xf32>
      %168 = vector.broadcast %167 : vector<1x256xf32> to vector<8x256xf32>
      %169 = vector.shape_cast %157 : vector<1x256xf32> to vector<1x256xf32>
      %170 = vector.broadcast %169 : vector<1x256xf32> to vector<8x256xf32>
      %171 = vector.shape_cast %5 : vector<1x256xf32> to vector<1x256xf32>
      %172 = vector.broadcast %171 : vector<1x256xf32> to vector<8x256xf32>
      %c0_i32_38 = arith.constant 0 : i32
      %173 = vector.broadcast %c0_i32_38 : i32 to vector<8x256xi32>
      %174 = arith.cmpi eq, %166, %173 : vector<8x256xi32>
      %c1_i32_39 = arith.constant 1 : i32
      %175 = vector.broadcast %c1_i32_39 : i32 to vector<8x256xi32>
      %176 = arith.cmpi eq, %166, %175 : vector<8x256xi32>
      %c2_i32_40 = arith.constant 2 : i32
      %177 = vector.broadcast %c2_i32_40 : i32 to vector<8x256xi32>
      %178 = arith.cmpi eq, %166, %177 : vector<8x256xi32>
      %cst_41 = arith.constant 0.000000e+00 : f32
      %179 = vector.broadcast %cst_41 : f32 to vector<8x256xf32>
      %180 = arith.select %178, %172, %179 : vector<8x256xi1>, vector<8x256xf32>
      %181 = arith.select %176, %170, %180 : vector<8x256xi1>, vector<8x256xf32>
      %182 = arith.select %174, %168, %181 : vector<8x256xi1>, vector<8x256xf32>
      %183 = tpu.transpose %182, [1, 0] : vector<8x256xf32> -> vector<256x8xf32>
      %c0_42 = arith.constant 0 : index
      %c0_43 = arith.constant 0 : index
      %184 = vector.load %arg10[%c0_42, %c0_43] : memref<256x8xf32, #tpu.memory_space<vmem>>, vector<256x8xf32>
      tpu.vector_store %arg10[%c0_42, %c0_43], %183 {strides = array<i32>} : memref<256x8xf32, #tpu.memory_space<vmem>>, vector<256x8xf32>,
      %cst_44 = arith.constant 0.000000e+00 : f32
      %185 = vector.broadcast %cst_44 : f32 to vector<1x8x128xf32>
      %186 = vector.broadcast %76 : f32 to vector<1x8x128xf32>
      %187 = arith.addf %185, %186 : vector<1x8x128xf32>
      %c0_45 = arith.constant 0 : index
      %c0_46 = arith.constant 0 : index
      %c0_47 = arith.constant 0 : index
      %188 = vector.load %arg6[%c0_45, %c0_46, %c0_47] : memref<1x8x128xf32, #tpu.memory_space<vmem>>, vector<1x8x128xf32>
      tpu.vector_store %arg6[%c0_45, %c0_46, %c0_47], %187 {strides = array<i32>} : memref<1x8x128xf32, #tpu.memory_space<vmem>>, vector<1x8x128xf32>,
      %cst_48 = arith.constant 0.000000e+00 : f32
      %189 = vector.broadcast %cst_48 : f32 to vector<1x8x128xf32>
      %190 = vector.shape_cast %5 : vector<1x256xf32> to vector<1x1x256xf32>
      %cst_49 = arith.constant dense<0.000000e+00> : vector<1xf32>
      %191 = vector.multi_reduction <add>, %190, %cst_49 [1, 2] : vector<1x1x256xf32> to vector<1xf32>
      %192 = vector.shape_cast %191 : vector<1xf32> to vector<1x1x1xf32>
      %193 = vector.extract %192[0, 0, 0] : f32 from vector<1x1x1xf32>
      %194 = vector.broadcast %193 : f32 to vector<1x8x128xf32>
      %195 = arith.addf %189, %194 : vector<1x8x128xf32>
      %c0_50 = arith.constant 0 : index
      %c0_51 = arith.constant 0 : index
      %c0_52 = arith.constant 0 : index
      %196 = vector.load %arg8[%c0_50, %c0_51, %c0_52] : memref<1x8x128xf32, #tpu.memory_space<vmem>>, vector<1x8x128xf32>
      tpu.vector_store %arg8[%c0_50, %c0_51, %c0_52], %195 {strides = array<i32>} : memref<1x8x128xf32, #tpu.memory_space<vmem>>, vector<1x8x128xf32>,
      %cst_53 = arith.constant 0.000000e+00 : f32
      %197 = vector.broadcast %cst_53 : f32 to vector<1x8x128xf32>
      %c0_54 = arith.constant 0 : index
      %c0_55 = arith.constant 0 : index
      %c0_56 = arith.constant 0 : index
      %198 = vector.load %arg7[%c0_54, %c0_55, %c0_56] : memref<1x8x128xf32, #tpu.memory_space<vmem>>, vector<1x8x128xf32>
      tpu.vector_store %arg7[%c0_54, %c0_55, %c0_56], %197 {strides = array<i32>} : memref<1x8x128xf32, #tpu.memory_space<vmem>>, vector<1x8x128xf32>,
    } else {
    }
    %c128_i32 = arith.constant 128 : i32
    %9 = arith.muli %arg1, %c128_i32 : i32
    %10 = tpu.assume_multiple %9, 128 : i32
    %11 = arith.index_cast %10 : i32 to index
    %c0_4 = arith.constant 0 : index
    %12 = vector.load %arg10[%11, %c0_4] : memref<256x8xf32, #tpu.memory_space<vmem>>, vector<128x8xf32>
    %13 = vector.extract_strided_slice %12 {offsets = [0, 0], sizes = [128, 1], strides = [1, 1]} : vector<128x8xf32> to vector<128x1xf32>
    %14 = vector.extract_strided_slice %12 {offsets = [0, 1], sizes = [128, 1], strides = [1, 1]} : vector<128x8xf32> to vector<128x1xf32>
    %15 = vector.extract_strided_slice %12 {offsets = [0, 2], sizes = [128, 1], strides = [1, 1]} : vector<128x8xf32> to vector<128x1xf32>
    %cst = arith.constant 5.000000e-01 : f32
    %16 = vector.broadcast %cst : f32 to vector<128x1xf32>
    %17 = arith.cmpf ogt, %15, %16 : vector<128x1xf32>
    %c0_5 = arith.constant 0 : index
    %c0_6 = arith.constant 0 : index
    %18 = vector.load %arg9[%c0_5, %c0_6] : memref<1x256xf32, #tpu.memory_space<vmem>>, vector<1x256xf32>
    %19 = tpu.iota {dimensions = array<i32: 0>} : vector<128x256xi32>
    %20 = vector.broadcast %10 : i32 to vector<128x256xi32>
    %21 = arith.addi %19, %20 : vector<128x256xi32>
    %22 = tpu.iota {dimensions = array<i32: 1>} : vector<128x256xi32>
    %23 = vector.broadcast %18 : vector<1x256xf32> to vector<128x256xf32>
    %24 = vector.broadcast %13 : vector<128x1xf32> to vector<128x256xf32>
    %25 = arith.cmpf ogt, %23, %24 : vector<128x256xf32>
    %26 = vector.broadcast %18 : vector<1x256xf32> to vector<128x256xf32>
    %27 = vector.broadcast %13 : vector<128x1xf32> to vector<128x256xf32>
    %28 = arith.cmpf oeq, %26, %27 : vector<128x256xf32>
    %29 = arith.cmpi slt, %22, %21 : vector<128x256xi32>
    %30 = arith.andi %28, %29 : vector<128x256xi1>
    %31 = arith.ori %25, %30 : vector<128x256xi1>
    %cst_7 = arith.constant 1.000000e+00 : bf16
    %32 = vector.broadcast %cst_7 : bf16 to vector<256x128xbf16>
    %33 = arith.extui %31 : vector<128x256xi1> to vector<128x256xi32>
    %34 = arith.sitofp %33 : vector<128x256xi32> to vector<128x256xf32>
    %35 = arith.truncf %34 : vector<128x256xf32> to vector<128x256xbf16>
    %cst_8 = arith.constant dense<0.000000e+00> : vector<128x128xf32>
    %36 = tpu.matmul %35, %32, %cst_8 {dimension_numbers = #tpu.dot_dimension_numbers<[1], [0], [0], [1], [0, 0, 1, 1], [], []>} : vector<128x256xbf16>, vector<256x128xbf16>, vector<128x128xf32> -> vector<128x128xf32>
    %37 = vector.extract_strided_slice %36 {offsets = [0, 0], sizes = [128, 1], strides = [1, 1]} : vector<128x128xf32> to vector<128x1xf32>
    %38 = vector.shape_cast %5 : vector<1x256xf32> to vector<1x1x256xf32>
    %cst_9 = arith.constant dense<0.000000e+00> : vector<1xf32>
    %39 = vector.multi_reduction <add>, %38, %cst_9 [1, 2] : vector<1x1x256xf32> to vector<1xf32>
    %40 = vector.shape_cast %39 : vector<1xf32> to vector<1x1x1xf32>
    %41 = vector.extract %40[0, 0, 0] : f32 from vector<1x1x1xf32>
    %cst_10 = arith.constant 3.000000e+00 : f32
    %42 = arith.mulf %cst_10, %41 : f32
    %cst_11 = arith.constant 1.990000e+02 : f32
    %43 = arith.minimumf %42, %cst_11 : f32
    %44 = vector.broadcast %43 : f32 to vector<128x1xf32>
    %45 = arith.cmpf olt, %37, %44 : vector<128x1xf32>
    %46 = arith.ori %17, %45 : vector<128x1xi1>
    %47 = arith.extui %46 : vector<128x1xi1> to vector<128x1xi32>
    %48 = arith.sitofp %47 : vector<128x1xi32> to vector<128x1xf32>
    %c0_12 = arith.constant 0 : index
    %c0_13 = arith.constant 0 : index
    %c0_14 = arith.constant 0 : index
    %49 = vector.load %arg7[%c0_12, %c0_13, %c0_14] : memref<1x8x128xf32, #tpu.memory_space<vmem>>, vector<1x8x128xf32>
    %50 = arith.mulf %14, %48 : vector<128x1xf32>
    %51 = vector.shape_cast %50 : vector<128x1xf32> to vector<1x128x1xf32>
    %cst_15 = arith.constant dense<0.000000e+00> : vector<1xf32>
    %52 = vector.multi_reduction <add>, %51, %cst_15 [1, 2] : vector<1x128x1xf32> to vector<1xf32>
    %53 = vector.shape_cast %52 : vector<1xf32> to vector<1x1x1xf32>
    %54 = vector.extract %53[0, 0, 0] : f32 from vector<1x1x1xf32>
    %55 = vector.broadcast %54 : f32 to vector<1x8x128xf32>
    %56 = arith.addf %49, %55 : vector<1x8x128xf32>
    %c0_16 = arith.constant 0 : index
    %c0_17 = arith.constant 0 : index
    %c0_18 = arith.constant 0 : index
    %57 = vector.load %arg7[%c0_16, %c0_17, %c0_18] : memref<1x8x128xf32, #tpu.memory_space<vmem>>, vector<1x8x128xf32>
    tpu.vector_store %arg7[%c0_16, %c0_17, %c0_18], %56 {strides = array<i32>} : memref<1x8x128xf32, #tpu.memory_space<vmem>>, vector<1x8x128xf32>,
    return
  }
  func.func @transform_0(%arg0: i32, %arg1: i32) -> (i32, i32, i32) {
    %c0_i32 = arith.constant 0 : i32
    %c0_i32_0 = arith.constant 0 : i32
    %c0_i32_1 = arith.constant 0 : i32
    return %arg0, %c0_i32, %c0_i32_0 : i32, i32, i32
  }
  func.func @transform_1(%arg0: i32, %arg1: i32) -> (i32, i32, i32) {
    %c0_i32 = arith.constant 0 : i32
    %c0_i32_0 = arith.constant 0 : i32
    %c0_i32_1 = arith.constant 0 : i32
    return %arg0, %c0_i32, %c0_i32_0 : i32, i32, i32
  }
  func.func @transform_2(%arg0: i32, %arg1: i32) -> (i32, i32, i32) {
    %c0_i32 = arith.constant 0 : i32
    %c0_i32_0 = arith.constant 0 : i32
    %c0_i32_1 = arith.constant 0 : i32
    return %arg0, %c0_i32, %c0_i32_0 : i32, i32, i32
  }
  func.func @transform_3(%arg0: i32, %arg1: i32) -> (i32, i32, i32) {
    %c0_i32 = arith.constant 0 : i32
    %c0_i32_0 = arith.constant 0 : i32
    %c0_i32_1 = arith.constant 0 : i32
    return %arg0, %c0_i32, %c0_i32_0 : i32, i32, i32
  }
  func.func @transform_4(%arg0: i32, %arg1: i32) -> (i32, i32, i32) {
    %c0_i32 = arith.constant 0 : i32
    %c0_i32_0 = arith.constant 0 : i32
    %c0_i32_1 = arith.constant 0 : i32
    return %arg0, %c0_i32, %c0_i32_0 : i32, i32, i32
  }
  func.func @transform_5(%arg0: i32, %arg1: i32) -> (i32, i32, i32) {
    %c0_i32 = arith.constant 0 : i32
    %c0_i32_0 = arith.constant 0 : i32
    %c0_i32_1 = arith.constant 0 : i32
    return %arg0, %c0_i32, %c0_i32_0 : i32, i32, i32
  }
  func.func @transform_6(%arg0: i32, %arg1: i32) -> (i32, i32, i32) {
    %c0_i32 = arith.constant 0 : i32
    %c0_i32_0 = arith.constant 0 : i32
    %c0_i32_1 = arith.constant 0 : i32
    return %arg0, %c0_i32, %c0_i32_0 : i32, i32, i32
  }
}

</mosaic_0001>

<llo_original>
// kernel: tpu_custom_call.1
$region0: #{tpu_custom_call.1}
  #allocation0 [shape = 'u32[]', space=smem, size = 0x4, offset = 0x4, fixed_abs, tag = 'smem constant byte address 0x4 - core index']
  #allocation1 [shape = 'u32[72,128]{1,0:T(1,128)}', space=vmem, size = 0x9000, scoped, tag = 'internal scratch']
  #allocation2 [shape = 'f32[1,256]{1,0:T(1,128)}', space=vmem, size = 0x400, scoped, tag = 'scratch operand']
  #allocation3 [shape = 'f32[256,8]{1,0:T(8,128)}', space=vmem, size = 0x20000, scoped, tag = 'scratch operand']
  %s0 = inlined_call_operand.vmem [shape: f32[2,4,256], index: 0, kind: input, shape index: {}]
  %s1 = inlined_call_operand.vmem [shape: f32[2,6,256], index: 1, kind: input, shape index: {}]
  %s2 = inlined_call_operand.vmem [shape: f32[2,4,256], index: 2, kind: input, shape index: {}]
  %s3 = inlined_call_operand.vmem [shape: s32[2,1,256], index: 3, kind: input, shape index: {}]
  %s4 = inlined_call_operand.hbm [shape: f32[2,8,128], index: 4, kind: output, shape index: {0}]
  %s5 = inlined_call_operand.hbm [shape: f32[2,8,128], index: 5, kind: output, shape index: {1}]
  %s6 = inlined_call_operand.hbm [shape: f32[2,8,128], index: 6, kind: output, shape index: {2}]
  %7 = xla_tuple %s4, %s5, %s6
  %s8 = sld [smem:[#allocation0]]
  $region69: #{tpu_custom_call.1} parent=0
    _
  %s10 = ssub.s32 1, %s8
  %s11 = scalar_select 0, %s10, %s8
  $region1: #{tpu_custom_call.1} parent=0
    #allocation4 [shape = 'u8[8192]{0}', space=vmem, size = 0x2000, scoped, tag = 'output window, operand 0']
    #allocation5 [shape = 's32[2]{0}', space=sflag, size = 0x8, scoped, tag = 'scoped memory for tpu_custom_call.1']
    #allocation6 [shape = 'u8[8192]{0}', space=vmem, size = 0x2000, scoped, tag = 'output window, operand 1']
    #allocation7 [shape = 's32[2]{0}', space=sflag, size = 0x8, scoped, tag = 'scoped memory for tpu_custom_call.1']
    #allocation8 [shape = 'u8[8192]{0}', space=vmem, size = 0x2000, scoped, tag = 'output window, operand 2']
    %12 = vsyncpa [#allocation5], 0
    %s13 = scalar_lea.sflag [#allocation5], 1
    %14 = vsyncpa %s13, 0
    %15 = vsyncpa [#allocation7], 0
    %s16 = scalar_lea.sflag [#allocation7], 1
    %17 = vsyncpa %s16, 0
    loop: start=0, step=1, limit=6
    $region2: #{tpu_custom_call.1} parent=1 // loop_pre_header
      _
    $region3: #{tpu_custom_call.1} parent=1 // loop_header
      %s19 = sphi 0, %s23
      %p20 = scmp.ge.s32.totalorder %s19, 6
      %s26 = sphi 0, %s38
      %s27 = sphi 0, %s34
      %s28 = sphi 0, %s26
      %s29 = sphi 0, %s27
      %s30 = sphi 0, %s28
      %s31 = sphi 0, %s29
      %s41 = sphi 0, %s43
      %s44 = sphi 0, %s41
      %s45 = sphi 0, %s44
      %s61 = sphi 0, %s45
      %s67 = sphi 0, %s69
      %s70 = sphi 0, %s67
      %s71 = sphi 0, %s70
      %s87 = sphi 0, %s71
      %s93 = sphi 0, %s95
      %s96 = sphi 0, %s93
      %s97 = sphi 0, %s96
      %s113 = sphi 0, %s97
      %s119 = sphi 0, %s121
      %s122 = sphi 0, %s119
      %s123 = sphi 0, %s122
      %s139 = sphi 0, %s123
      %s145 = sphi 0, %s147
      %s148 = sphi 0, %s145
      %s149 = sphi 0, %s148
      %s165 = sphi 0, %s149
      %s171 = sphi 0, %s173
      %s174 = sphi 0, %s171
      %s175 = sphi 0, %s174
      %s191 = sphi 0, %s175
      %s197 = sphi 0, %s199
      %s200 = sphi 0, %s197
      %s201 = sphi 0, %s200
      %s217 = sphi 0, %s201
    $region4: #{tpu_custom_call.1} parent=1 // loop_header_branch
      %22 = sbr.rel (%p20) target = $region8
    $region5: #{tpu_custom_call.1} parent=1 // loop_body
      %s24 = ssub.s32 %s19, 1
      %s25 = ssub.s32 %s19, 2
      %s32 = sadd.s32 1, %s27
      %p33 = scmp.ge.s32.totalorder %s32, 2
      %s34 = scalar_select %p33, 0, %s32
      %s35 = sadd.s32 1, %s26
      %s36 = scalar_select %p33, %s35, %s26
      %p37 = scmp.ge.s32.totalorder %s36, 2
      %s38 = scalar_select %p37, 0, %s36
      %s39 = ssub.s32 %s26, %s38
      %p40 = scmp.eq.s32.totalorder %s39, 0
      %s42 = sadd.s32 %s41, 1
      %s43 = scalar_select %p40, %s41, %s42
      %p46 = pneg %p40
      %p47 = scmp.eq.s32.totalorder %s19, 3
      %p48 = por %p46, %p47
      %p49 = scmp.ne.s32.totalorder %s41, %s44
      %p50 = scmp.eq.s32.totalorder %s19, 0
      %p51 = por %p49, %p50
      %p52 = scmp.ne.s32.totalorder %s41, %s44
      %p53 = scmp.eq.s32.totalorder %s24, 3
      %p54 = por %p52, %p53
      %p55 = scmp.ne.s32.totalorder %s44, %s45
      %p56 = scmp.eq.s32.totalorder %s24, 0
      %p57 = por %p55, %p56
      %p58 = scmp.ne.s32.totalorder %s44, %s45
      %p59 = scmp.eq.s32.totalorder %s25, 3
      %p60 = por %p58, %p59
      %p62 = scmp.ne.s32.totalorder %s45, %s61
      %p63 = scmp.eq.s32.totalorder %s25, 0
      %p64 = por %p62, %p63
      %s65 = ssub.s32 %s26, %s38
      %p66 = scmp.eq.s32.totalorder %s65, 0
      %s68 = sadd.s32 %s67, 1
      %s69 = scalar_select %p66, %s67, %s68
      %p72 = pneg %p66
      %p73 = scmp.eq.s32.totalorder %s19, 3
      %p74 = por %p72, %p73
      %p75 = scmp.ne.s32.totalorder %s67, %s70
      %p76 = scmp.eq.s32.totalorder %s19, 0
      %p77 = por %p75, %p76
      %p78 = scmp.ne.s32.totalorder %s67, %s70
      %p79 = scmp.eq.s32.totalorder %s24, 3
      %p80 = por %p78, %p79
      %p81 = scmp.ne.s32.totalorder %s70, %s71
      %p82 = scmp.eq.s32.totalorder %s24, 0
      %p83 = por %p81, %p82
      %p84 = scmp.ne.s32.totalorder %s70, %s71
      %p85 = scmp.eq.s32.totalorder %s25, 3
      %p86 = por %p84, %p85
      %p88 = scmp.ne.s32.totalorder %s71, %s87
      %p89 = scmp.eq.s32.totalorder %s25, 0
      %p90 = por %p88, %p89
      %s91 = ssub.s32 %s26, %s38
      %p92 = scmp.eq.s32.totalorder %s91, 0
      %s94 = sadd.s32 %s93, 1
      %s95 = scalar_select %p92, %s93, %s94
      %p98 = pneg %p92
      %p99 = scmp.eq.s32.totalorder %s19, 3
      %p100 = por %p98, %p99
      %p101 = scmp.ne.s32.totalorder %s93, %s96
      %p102 = scmp.eq.s32.totalorder %s19, 0
      %p103 = por %p101, %p102
      %p104 = scmp.ne.s32.totalorder %s93, %s96
      %p105 = scmp.eq.s32.totalorder %s24, 3
      %p106 = por %p104, %p105
      %p107 = scmp.ne.s32.totalorder %s96, %s97
      %p108 = scmp.eq.s32.totalorder %s24, 0
      %p109 = por %p107, %p108
      %p110 = scmp.ne.s32.totalorder %s96, %s97
      %p111 = scmp.eq.s32.totalorder %s25, 3
      %p112 = por %p110, %p111
      %p114 = scmp.ne.s32.totalorder %s97, %s113
      %p115 = scmp.eq.s32.totalorder %s25, 0
      %p116 = por %p114, %p115
      %s117 = ssub.s32 %s26, %s38
      %p118 = scmp.eq.s32.totalorder %s117, 0
      %s120 = sadd.s32 %s119, 1
      %s121 = scalar_select %p118, %s119, %s120
      %p124 = pneg %p118
      %p125 = scmp.eq.s32.totalorder %s19, 3
      %p126 = por %p124, %p125
      %p127 = scmp.ne.s32.totalorder %s119, %s122
      %p128 = scmp.eq.s32.totalorder %s19, 0
      %p129 = por %p127, %p128
      %p130 = scmp.ne.s32.totalorder %s119, %s122
      %p131 = scmp.eq.s32.totalorder %s24, 3
      %p132 = por %p130, %p131
      %p133 = scmp.ne.s32.totalorder %s122, %s123
      %p134 = scmp.eq.s32.totalorder %s24, 0
      %p135 = por %p133, %p134
      %p136 = scmp.ne.s32.totalorder %s122, %s123
      %p137 = scmp.eq.s32.totalorder %s25, 3
      %p138 = por %p136, %p137
      %p140 = scmp.ne.s32.totalorder %s123, %s139
      %p141 = scmp.eq.s32.totalorder %s25, 0
      %p142 = por %p140, %p141
      %s143 = ssub.s32 %s26, %s38
      %p144 = scmp.eq.s32.totalorder %s143, 0
      %s146 = sadd.s32 %s145, 1
      %s147 = scalar_select %p144, %s145, %s146
      %p150 = pneg %p144
      %p151 = scmp.eq.s32.totalorder %s19, 3
      %p152 = por %p150, %p151
      %p153 = scmp.ne.s32.totalorder %s145, %s148
      %p154 = scmp.eq.s32.totalorder %s19, 0
      %p155 = por %p153, %p154
      %p156 = scmp.ne.s32.totalorder %s145, %s148
      %p157 = scmp.eq.s32.totalorder %s24, 3
      %p158 = por %p156, %p157
      %p159 = scmp.ne.s32.totalorder %s148, %s149
      %p160 = scmp.eq.s32.totalorder %s24, 0
      %p161 = por %p159, %p160
      %p162 = scmp.ne.s32.totalorder %s148, %s149
      %p163 = scmp.eq.s32.totalorder %s25, 3
      %p164 = por %p162, %p163
      %p166 = scmp.ne.s32.totalorder %s149, %s165
      %p167 = scmp.eq.s32.totalorder %s25, 0
      %p168 = por %p166, %p167
      %s169 = ssub.s32 %s26, %s38
      %p170 = scmp.eq.s32.totalorder %s169, 0
      %s172 = sadd.s32 %s171, 1
      %s173 = scalar_select %p170, %s171, %s172
      %p176 = pneg %p170
      %p177 = scmp.eq.s32.totalorder %s19, 3
      %p178 = por %p176, %p177
      %p179 = scmp.ne.s32.totalorder %s171, %s174
      %p180 = scmp.eq.s32.totalorder %s19, 0
      %p181 = por %p179, %p180
      %p182 = scmp.ne.s32.totalorder %s171, %s174
      %p183 = scmp.eq.s32.totalorder %s24, 3
      %p184 = por %p182, %p183
      %p185 = scmp.ne.s32.totalorder %s174, %s175
      %p186 = scmp.eq.s32.totalorder %s24, 0
      %p187 = por %p185, %p186
      %p188 = scmp.ne.s32.totalorder %s174, %s175
      %p189 = scmp.eq.s32.totalorder %s25, 3
      %p190 = por %p188, %p189
      %p192 = scmp.ne.s32.totalorder %s175, %s191
      %p193 = scmp.eq.s32.totalorder %s25, 0
      %p194 = por %p192, %p193
      %s195 = ssub.s32 %s26, %s38
      %p196 = scmp.eq.s32.totalorder %s195, 0
      %s198 = sadd.s32 %s197, 1
      %s199 = scalar_select %p196, %s197, %s198
      %p202 = pneg %p196
      %p203 = scmp.eq.s32.totalorder %s19, 3
      %p204 = por %p202, %p203
      %p205 = scmp.ne.s32.totalorder %s197, %s200
      %p206 = scmp.eq.s32.totalorder %s19, 0
      %p207 = por %p205, %p206
      %p208 = scmp.ne.s32.totalorder %s197, %s200
      %p209 = scmp.eq.s32.totalorder %s24, 3
      %p210 = por %p208, %p209
      %p211 = scmp.ne.s32.totalorder %s200, %s201
      %p212 = scmp.eq.s32.totalorder %s24, 0
      %p213 = por %p211, %p212
      %p214 = scmp.ne.s32.totalorder %s200, %s201
      %p215 = scmp.eq.s32.totalorder %s25, 3
      %p216 = por %p214, %p215
      %p218 = scmp.ne.s32.totalorder %s201, %s217
      %p219 = scmp.eq.s32.totalorder %s25, 0
      %p220 = por %p218, %p219
      %p221 = scmp.le.s32.totalorder 1, %s19
      %p222 = scmp.lt.s32.totalorder %s19, 5
      %p223 = pnand %p221, %p222
      %p224 = pneg %p223
      // Predicated region
      $region9: #{tpu_custom_call.1} parent=5 // pred_check
        _
      $region10: #{tpu_custom_call.1} parent=5 // pred_check_branch
        %226 = sbr.rel (%p223) target = $region12
      $region11: #{tpu_custom_call.1} parent=5 // pred_region
        %s227 = ssub.s32 %s19, 1
      $region12: #{tpu_custom_call.1} parent=5 // pred_fallthru
        _
      %p228 = scmp.lt.s32.totalorder %s19, 4
      // Predicated region
      $region13: #{tpu_custom_call.1} parent=5 // pred_check
        %p229 = pneg %p228
      $region14: #{tpu_custom_call.1} parent=5 // pred_check_branch
        %231 = sbr.rel (%p229) target = $region16
      $region15: #{tpu_custom_call.1} parent=5 // pred_region
        // Predicated region
        $region17: #{tpu_custom_call.1} parent=15 // pred_check
          %p232 = pneg %p51
        $region18: #{tpu_custom_call.1} parent=15 // pred_check_branch
          %234 = sbr.rel (%p232) target = $region20
        $region19: #{tpu_custom_call.1} parent=15 // pred_region
          %p235 = scmp.lt.s32.totalorder %s26, 1
          %s236 = scalar_select %p235, %s26, 1
          %s237 = smul.addr %s236, 2
          %s238 = smul.addr %s237, 4
          %s239 = scalar_lea.vmem %s0, %s238
        $region20: #{tpu_custom_call.1} parent=15 // pred_fallthru
          _
        // Predicated region
        $region21: #{tpu_custom_call.1} parent=15 // pred_check
          %p240 = pneg %p77
        $region22: #{tpu_custom_call.1} parent=15 // pred_check_branch
          %242 = sbr.rel (%p240) target = $region24
        $region23: #{tpu_custom_call.1} parent=15 // pred_region
          %p243 = scmp.lt.s32.totalorder %s26, 1
          %s244 = scalar_select %p243, %s26, 1
          %s245 = smul.addr %s244, 2
          %s246 = smul.addr %s245, 8
          %s247 = scalar_lea.vmem %s1, %s246
        $region24: #{tpu_custom_call.1} parent=15 // pred_fallthru
          _
        // Predicated region
        $region25: #{tpu_custom_call.1} parent=15 // pred_check
          %p248 = pneg %p103
        $region26: #{tpu_custom_call.1} parent=15 // pred_check_branch
          %250 = sbr.rel (%p248) target = $region28
        $region27: #{tpu_custom_call.1} parent=15 // pred_region
          %p251 = scmp.lt.s32.totalorder %s26, 1
          %s252 = scalar_select %p251, %s26, 1
          %s253 = smul.addr %s252, 2
          %s254 = smul.addr %s253, 4
          %s255 = scalar_lea.vmem %s2, %s254
        $region28: #{tpu_custom_call.1} parent=15 // pred_fallthru
          _
        // Predicated region
        $region29: #{tpu_custom_call.1} parent=15 // pred_check
          %p256 = pneg %p129
        $region30: #{tpu_custom_call.1} parent=15 // pred_check_branch
          %258 = sbr.rel (%p256) target = $region32
        $region31: #{tpu_custom_call.1} parent=15 // pred_region
          %p259 = scmp.lt.s32.totalorder %s26, 1
          %s260 = scalar_select %p259, %s26, 1
          %s261 = smul.addr %s260, 2
          %s262 = scalar_lea.vmem %s3, %s261
        $region32: #{tpu_custom_call.1} parent=15 // pred_fallthru
          _
      $region16: #{tpu_custom_call.1} parent=5 // pred_fallthru
        _
      %p263 = scmp.le.s32.totalorder 1, %s19
      %p264 = scmp.lt.s32.totalorder %s19, 5
      %p265 = pnand %p263, %p264
      %p266 = pneg %p265
      // Predicated region
      $region33: #{tpu_custom_call.1} parent=5 // pred_check
        _
      $region34: #{tpu_custom_call.1} parent=5 // pred_check_branch
        %268 = sbr.rel (%p265) target = $region36
      $region35: #{tpu_custom_call.1} parent=5 // pred_region
        %s269 = ssub.s32 %s19, 1
        %p270 = scmp.lt.s32.totalorder %s28, 1
        %s271 = scalar_select %p270, %s28, 1
        %s272 = smul.addr %s271, 2
        %s273 = smul.addr %s272, 4
        %s274 = scalar_lea.vmem %s0, %s273
        %p275 = pneg %p57
        %p276 = pneg %p54
        %p277 = scmp.lt.s32.totalorder %s28, 1
        %s278 = scalar_select %p277, %s28, 1
        %s279 = smul.addr %s278, 2
        %s280 = smul.addr %s279, 8
        %s281 = scalar_lea.vmem %s1, %s280
        %p282 = pneg %p83
        %p283 = pneg %p80
        %p284 = scmp.lt.s32.totalorder %s28, 1
        %s285 = scalar_select %p284, %s28, 1
        %s286 = smul.addr %s285, 2
        %s287 = smul.addr %s286, 4
        %s288 = scalar_lea.vmem %s2, %s287
        %p289 = pneg %p109
        %p290 = pneg %p106
        %p291 = scmp.lt.s32.totalorder %s28, 1
        %s292 = scalar_select %p291, %s28, 1
        %s293 = smul.addr %s292, 2
        %s294 = scalar_lea.vmem %s3, %s293
        %p295 = pneg %p135
        %p296 = pneg %p132
        %p297 = pneg %p161
        %p298 = pneg %p158
        %s299 = sand.u32 %s148, 1
        %s300 = scalar_lea.sflag [#allocation5], %s299
        %s301 = sand.u32 %s148, 1
        %s302 = smul.addr %s301, 8
        %s303 = scalar_lea.vmem [#allocation4], %s302
        %p304 = pneg %p187
        %p305 = pneg %p184
        %s306 = sand.u32 %s24, 1
        %s307 = scalar_lea.sflag [#allocation7], %s306
        %s308 = sand.u32 %s174, 1
        %s309 = smul.addr %s308, 8
        %s310 = scalar_lea.vmem [#allocation6], %s309
        %p311 = pneg %p213
        %p312 = pneg %p210
        %s313 = sand.u32 %s24, 1
        %s314 = scalar_lea.sflag [#allocation7], %s313
        %s315 = sand.u32 %s200, 1
        %s316 = smul.addr %s315, 8
        %s317 = scalar_lea.vmem [#allocation8], %s316
        %p318 = scmp.lt.s32.totalorder %s28, 1
        %s319 = scalar_select %p318, %s28, 1
        %s320 = smul.addr %s319, 2
        %s321 = smul.addr %s320, 4
        %s322 = scalar_lea.vmem %s0, %s321
        %p323 = scmp.lt.s32.totalorder %s28, 1
        %s324 = scalar_select %p323, %s28, 1
        %s325 = smul.addr %s324, 2
        %s326 = smul.addr %s325, 8
        %s327 = scalar_lea.vmem %s1, %s326
        %p328 = scmp.lt.s32.totalorder %s28, 1
        %s329 = scalar_select %p328, %s28, 1
        %s330 = smul.addr %s329, 2
        %s331 = smul.addr %s330, 4
        %s332 = scalar_lea.vmem %s2, %s331
        %p333 = scmp.lt.s32.totalorder %s28, 1
        %s334 = scalar_select %p333, %s28, 1
        %s335 = smul.addr %s334, 2
        %s336 = scalar_lea.vmem %s3, %s335
        %v338 = vld [vmem:[%s336] sm:$0x3]
        %vm339 = vcmp.gt.s32.totalorder %v338, 0
        %v340 = vsel %vm339, 1, 0
        %v341 = vcvt.s32.f32 %v340
        %p342 = scmp.eq.s32.totalorder %s29, 0
        // Predicated region
        $region37: #{tpu_custom_call.1} parent=35 // pred_check
          %p343 = pneg %p342
        $region38: #{tpu_custom_call.1} parent=35 // pred_check_branch
          %345 = sbr.rel (%p343) target = $region40
        $region39: #{tpu_custom_call.1} parent=35 // pred_region
          %v346 = vld [vmem:[%s322] sm:$0xff]
          %v347 = vld [vmem:[%s332] sm:$0xff]
          %v348 = vsub.f32 %v346, %v347
          %v349 = vand.u32 2147483647, %v348
          %vm350 = vcmp.lt.f32.partialorder %v349, 1.0
          %v351 = vmul.f32 %v348, 0.5
          %v352 = vmul.f32 %v351, %v348
          %v353 = vsub.f32 %v349, 0.5
          %v354 = vsel %vm350, %v352, %v353
          %v356 = vperm.slane %v341, 0
          %v357 = vperm.slane %v341, 1
          %v358 = vrot.slane %v357, 4
          %vm359 = vcmask 1043456
          %v360 = vsel %vm359, %v356, %v358
          %v362 = vmul.f32 %v354, %v360
          %364 = vst [vmem:[#allocation1] ss:$2 sm:$0xff] %v362
          %v365 = vld.sshfl [vmem:[#allocation1] sm:$0xff pattern:$0x75316420]
          %v366 = vld.sshfl [vmem:[#allocation1 + $0x8] sm:$0xff pattern:$0x75316420]
          %v369 = vsel %vm359, %v365, 0.0
          %v370 = vsel %vm359, %v366, 0.0
          %v371 = vadd.f32 %v369, %v370
          %372 = vadd.xlane.f32.xlu0 %v371
          %v373 = vpop.xlane.xlu0 %372
          %v374 = vrot.slane %v373, 4
          %v375 = vadd.f32 %v373, %v374
          %v376 = vrot.slane %v375, 2
          %v377 = vadd.f32 %v375, %v376
          %v378 = vrot.slane %v377, 1
          %v379 = vadd.f32 %v377, %v378
          %s380 = vtos %v379
          %v381 = vld [vmem:[%s327] sm:$0x3f]
          %v382 = vld [vmem:[%s327 + $0x8] sm:$0x3f]
          %v385 = vrot.slane %v381, 1
          %v386 = vrot.slane %v382, 1
          %v389 = vmax.f32 %v381, %v385
          %v390 = vmax.f32 %v382, %v386
          %v391 = vrot.slane %v381, 2
          %v392 = vrot.slane %v382, 2
          %v395 = vmax.f32 %v389, %v391
          %v396 = vmax.f32 %v390, %v392
          %v397 = vrot.slane %v381, 3
          %v398 = vrot.slane %v382, 3
          %v401 = vmax.f32 %v395, %v397
          %v402 = vmax.f32 %v396, %v398
          %v403 = vrot.slane %v381, 4
          %v404 = vrot.slane %v382, 4
          %v407 = vmax.f32 %v401, %v403
          %v408 = vmax.f32 %v402, %v404
          %v409 = vrot.slane %v381, 5
          %v410 = vrot.slane %v382, 5
          %v413 = vmax.f32 %v407, %v409
          %v414 = vmax.f32 %v408, %v410
          %v415 = vsub.f32 %v381, %v413
          %v416 = vsub.f32 %v382, %v414
          %v417 = vmul.f32 %v415, 1.442695
          %v418 = vpow.pop %v417
          %v419 = vmul.f32 %v416, 1.442695
          %v420 = vpow.pop %v419
          %v423 = vrot.slane %v413, 7
          %v424 = vrot.slane %v414, 7
          %v427 = vsub.f32 %v381, %v423
          %v428 = vsub.f32 %v382, %v424
          %v429 = vmul.f32 %v427, 1.442695
          %v430 = vpow.pop %v429
          %v431 = vmul.f32 %v428, 1.442695
          %v432 = vpow.pop %v431
          %v435 = vrot.slane %v430, 1
          %v436 = vrot.slane %v432, 1
          %v439 = vadd.f32 %v418, %v435
          %v440 = vadd.f32 %v420, %v436
          %v441 = vrot.slane %v413, 6
          %v442 = vrot.slane %v414, 6
          %v445 = vsub.f32 %v381, %v441
          %v446 = vsub.f32 %v382, %v442
          %v447 = vmul.f32 %v445, 1.442695
          %v448 = vpow.pop %v447
          %v449 = vmul.f32 %v446, 1.442695
          %v450 = vpow.pop %v449
          %v453 = vrot.slane %v448, 2
          %v454 = vrot.slane %v450, 2
          %v457 = vadd.f32 %v439, %v453
          %v458 = vadd.f32 %v440, %v454
          %v459 = vrot.slane %v413, 5
          %v460 = vrot.slane %v414, 5
          %v463 = vsub.f32 %v381, %v459
          %v464 = vsub.f32 %v382, %v460
          %v465 = vmul.f32 %v463, 1.442695
          %v466 = vpow.pop %v465
          %v467 = vmul.f32 %v464, 1.442695
          %v468 = vpow.pop %v467
          %v471 = vrot.slane %v466, 3
          %v472 = vrot.slane %v468, 3
          %v475 = vadd.f32 %v457, %v471
          %v476 = vadd.f32 %v458, %v472
          %v477 = vrot.slane %v413, 4
          %v478 = vrot.slane %v414, 4
          %v481 = vsub.f32 %v381, %v477
          %v482 = vsub.f32 %v382, %v478
          %v483 = vmul.f32 %v481, 1.442695
          %v484 = vpow.pop %v483
          %v485 = vmul.f32 %v482, 1.442695
          %v486 = vpow.pop %v485
          %v489 = vrot.slane %v484, 4
          %v490 = vrot.slane %v486, 4
          %v493 = vadd.f32 %v475, %v489
          %v494 = vadd.f32 %v476, %v490
          %v495 = vrot.slane %v413, 3
          %v496 = vrot.slane %v414, 3
          %v499 = vsub.f32 %v381, %v495
          %v500 = vsub.f32 %v382, %v496
          %v501 = vmul.f32 %v499, 1.442695
          %v502 = vpow.pop %v501
          %v503 = vmul.f32 %v500, 1.442695
          %v504 = vpow.pop %v503
          %v507 = vrot.slane %v502, 5
          %v508 = vrot.slane %v504, 5
          %v511 = vadd.f32 %v493, %v507
          %v512 = vadd.f32 %v494, %v508
          %vm513 = vcmp.eq.s32.totalorder %v338, 0
          %v514 = vrot.slane %v382, 7
          %vm515 = vcmask 1040384
          %v516 = vsel %vm515, %v381, %v514
          %v518 = vsel %vm513, %v516, 0.0
          %vm519 = vcmp.eq.s32.totalorder %v338, 1
          %520 = vst [vmem:[#allocation1] sm:$0xff] %v381
          %521 = vst [vmem:[#allocation1 + $0x9] sm:$0xff] %v382
          %s522 = scalar_lea.vmem [#allocation1], 1
          %v523 = vld [vmem:[%s522] ss:$9 sm:$0xff]
          %v525 = vsel %vm519, %v523, %v518
          %vm526 = vcmp.eq.s32.totalorder %v338, 2
          %527 = vst [vmem:[#allocation1] sm:$0xff] %v381
          %528 = vst [vmem:[#allocation1 + $0x9] sm:$0xff] %v382
          %s529 = scalar_lea.vmem [#allocation1], 2
          %v530 = vld [vmem:[%s529] ss:$9 sm:$0xff]
          %v532 = vsel %vm526, %v530, %v525
          %vm533 = vcmp.eq.s32.totalorder %v338, 3
          %534 = vst [vmem:[#allocation1] sm:$0xff] %v381
          %535 = vst [vmem:[#allocation1 + $0x9] sm:$0xff] %v382
          %s536 = scalar_lea.vmem [#allocation1], 3
          %v537 = vld [vmem:[%s536] ss:$9 sm:$0xff]
          %v539 = vsel %vm533, %v537, %v532
          %vm540 = vcmp.eq.s32.totalorder %v338, 4
          %541 = vst [vmem:[#allocation1] sm:$0xff] %v381
          %542 = vst [vmem:[#allocation1 + $0x9] sm:$0xff] %v382
          %s543 = scalar_lea.vmem [#allocation1], 4
          %v544 = vld [vmem:[%s543] ss:$9 sm:$0xff]
          %v546 = vsel %vm540, %v544, %v539
          %vm547 = vcmp.eq.s32.totalorder %v338, 5
          %548 = vst [vmem:[#allocation1] sm:$0xff] %v381
          %549 = vst [vmem:[#allocation1 + $0x9] sm:$0xff] %v382
          %s550 = scalar_lea.vmem [#allocation1], 5
          %v551 = vld [vmem:[%s550] ss:$9 sm:$0xff]
          %v553 = vsel %vm547, %v551, %v546
          %v554 = vlog2.pop %v511
          %v555 = vmul.f32 %v554, 0.6931472
          %v556 = vlog2.pop %v512
          %v557 = vmul.f32 %v556, 0.6931472
          %v558 = vadd.f32 %v555, %v413
          %v559 = vadd.f32 %v557, %v414
          %v561 = vperm.slane %v553, 0
          %v562 = vperm.slane %v553, 1
          %v565 = vsub.f32 %v558, %v561
          %v566 = vsub.f32 %v559, %v562
          %v567 = vlaneseq
          %v568 = vand.u32 %v567, 127
          %v569 = vadd.s32 %v568, 128
          %vm570 = vcmp.lt.s32.totalorder %v568, 200
          %vm571 = vcmp.lt.s32.totalorder %v569, 200
          %v574 = vrot.slane %v566, 7
          %v575 = vsel %vm515, %v565, %v574
          %v577 = vsel %vm339, 0.0, %v575
          %v579 = vperm.slane %v577, 0
          %v580 = vperm.slane %v577, 1
          %v583 = vsel %vm570, %v579, -1.0
          %v584 = vsel %vm571, %v580, -1.0
          %v587 = vrot.slane %v584, 7
          %v588 = vsel %vm515, %v583, %v587
          %v590 = vlaneseq
          %vm591 = vcmp.ge.s32.totalorder %v590, 0
          %vm592 = vcmp.lt.s32.totalorder %v590, 256
          %vm593 = vmand %vm591, %vm592
          %594 = vst.msk [vmem:[#allocation2] sm:$0x3] %vm593, %v588
          %v595 = vlaneseq
          %v596 = vshrl.u32 %v595, 7
          %v597 = vperm.slane %v583, 0
          %v598 = vperm.slane %v584, 0
          %v599 = vperm.slane %v565, 0
          %v600 = vperm.slane %v566, 0
          %vm603 = vcmp.eq.s32.totalorder %v596, 0
          %vm604 = vcmp.eq.s32.totalorder %v596, 1
          %vm605 = vcmp.eq.s32.totalorder %v596, 2
          %v606 = vsel %vm605, %v356, 0.0
          %v607 = vsel %vm605, %v357, 0.0
          %v608 = vsel %vm604, %v599, %v606
          %v609 = vsel %vm604, %v600, %v607
          %v610 = vsel %vm603, %v597, %v608
          %v611 = vsel %vm603, %v598, %v609
          %612 = vxpose.xlu0.b32.start [1/16] %v610, 128
          %613 = vxpose.xlu0.b32.cont [2/16] 0.0, 128
          %614 = vxpose.xlu0.b32.cont [3/16] 0.0, 128
          %615 = vxpose.xlu0.b32.cont [4/16] 0.0, 128
          %616 = vxpose.xlu0.b32.cont [5/16] 0.0, 128
          %617 = vxpose.xlu0.b32.cont [6/16] 0.0, 128
          %618 = vxpose.xlu0.b32.cont [7/16] 0.0, 128
          %619 = vxpose.xlu0.b32.cont [8/16] 0.0, 128
          %620 = vxpose.xlu0.b32.cont [9/16] 0.0, 128
          %621 = vxpose.xlu0.b32.cont [10/16] 0.0, 128
          %622 = vxpose.xlu0.b32.cont [11/16] 0.0, 128
          %623 = vxpose.xlu0.b32.cont [12/16] 0.0, 128
          %624 = vxpose.xlu0.b32.cont [13/16] 0.0, 128
          %625 = vxpose.xlu0.b32.cont [14/16] 0.0, 128
          %626 = vxpose.xlu0.b32.cont [15/16] 0.0, 128
          %627 = vxpose.xlu0.b32.end [16/16] 0.0, 128
          %v628 = vpop.trf.xlu0
          %v629 = vpop.trf.xlu0
          %v630 = vpop.trf.xlu0
          %v631 = vpop.trf.xlu0
          %v632 = vpop.trf.xlu0
          %v633 = vpop.trf.xlu0
          %v634 = vpop.trf.xlu0
          %v635 = vpop.trf.xlu0
          %v636 = vpop.trf.xlu0
          %v637 = vpop.trf.xlu0
          %v638 = vpop.trf.xlu0
          %v639 = vpop.trf.xlu0
          %v640 = vpop.trf.xlu0
          %v641 = vpop.trf.xlu0
          %v642 = vpop.trf.xlu0
          %v643 = vpop.trf.xlu0
          %644 = vxpose.xlu0.b32.start [1/16] %v611, 128
          %645 = vxpose.xlu0.b32.cont [2/16] 0.0, 128
          %646 = vxpose.xlu0.b32.cont [3/16] 0.0, 128
          %647 = vxpose.xlu0.b32.cont [4/16] 0.0, 128
          %648 = vxpose.xlu0.b32.cont [5/16] 0.0, 128
          %649 = vxpose.xlu0.b32.cont [6/16] 0.0, 128
          %650 = vxpose.xlu0.b32.cont [7/16] 0.0, 128
          %651 = vxpose.xlu0.b32.cont [8/16] 0.0, 128
          %652 = vxpose.xlu0.b32.cont [9/16] 0.0, 128
          %653 = vxpose.xlu0.b32.cont [10/16] 0.0, 128
          %654 = vxpose.xlu0.b32.cont [11/16] 0.0, 128
          %655 = vxpose.xlu0.b32.cont [12/16] 0.0, 128
          %656 = vxpose.xlu0.b32.cont [13/16] 0.0, 128
          %657 = vxpose.xlu0.b32.cont [14/16] 0.0, 128
          %658 = vxpose.xlu0.b32.cont [15/16] 0.0, 128
          %659 = vxpose.xlu0.b32.end [16/16] 0.0, 128
          %v660 = vpop.trf.xlu0
          %v661 = vpop.trf.xlu0
          %v662 = vpop.trf.xlu0
          %v663 = vpop.trf.xlu0
          %v664 = vpop.trf.xlu0
          %v665 = vpop.trf.xlu0
          %v666 = vpop.trf.xlu0
          %v667 = vpop.trf.xlu0
          %v668 = vpop.trf.xlu0
          %v669 = vpop.trf.xlu0
          %v670 = vpop.trf.xlu0
          %v671 = vpop.trf.xlu0
          %v672 = vpop.trf.xlu0
          %v673 = vpop.trf.xlu0
          %v674 = vpop.trf.xlu0
          %v675 = vpop.trf.xlu0
          %vm676 = vcmask 64512
          %677 = vst.msk [vmem:[#allocation3] sm:$0xff] %vm676, %v628
          %678 = vst.msk [vmem:[#allocation3 + $0x8] sm:$0xff] %vm676, %v629
          %679 = vst.msk [vmem:[#allocation3 + $0x10] sm:$0xff] %vm676, %v630
          %680 = vst.msk [vmem:[#allocation3 + $0x18] sm:$0xff] %vm676, %v631
          %681 = vst.msk [vmem:[#allocation3 + $0x20] sm:$0xff] %vm676, %v632
          %682 = vst.msk [vmem:[#allocation3 + $0x28] sm:$0xff] %vm676, %v633
          %683 = vst.msk [vmem:[#allocation3 + $0x30] sm:$0xff] %vm676, %v634
          %684 = vst.msk [vmem:[#allocation3 + $0x38] sm:$0xff] %vm676, %v635
          %685 = vst.msk [vmem:[#allocation3 + $0x40] sm:$0xff] %vm676, %v636
          %686 = vst.msk [vmem:[#allocation3 + $0x48] sm:$0xff] %vm676, %v637
          %687 = vst.msk [vmem:[#allocation3 + $0x50] sm:$0xff] %vm676, %v638
          %688 = vst.msk [vmem:[#allocation3 + $0x58] sm:$0xff] %vm676, %v639
          %689 = vst.msk [vmem:[#allocation3 + $0x60] sm:$0xff] %vm676, %v640
          %690 = vst.msk [vmem:[#allocation3 + $0x68] sm:$0xff] %vm676, %v641
          %691 = vst.msk [vmem:[#allocation3 + $0x70] sm:$0xff] %vm676, %v642
          %692 = vst.msk [vmem:[#allocation3 + $0x78] sm:$0xff] %vm676, %v643
          %693 = vst.msk [vmem:[#allocation3 + $0x80] sm:$0xff] %vm676, %v660
          %694 = vst.msk [vmem:[#allocation3 + $0x88] sm:$0xff] %vm676, %v661
          %695 = vst.msk [vmem:[#allocation3 + $0x90] sm:$0xff] %vm676, %v662
          %696 = vst.msk [vmem:[#allocation3 + $0x98] sm:$0xff] %vm676, %v663
          %697 = vst.msk [vmem:[#allocation3 + $0xa0] sm:$0xff] %vm676, %v664
          %698 = vst.msk [vmem:[#allocation3 + $0xa8] sm:$0xff] %vm676, %v665
          %699 = vst.msk [vmem:[#allocation3 + $0xb0] sm:$0xff] %vm676, %v666
          %700 = vst.msk [vmem:[#allocation3 + $0xb8] sm:$0xff] %vm676, %v667
          %701 = vst.msk [vmem:[#allocation3 + $0xc0] sm:$0xff] %vm676, %v668
          %702 = vst.msk [vmem:[#allocation3 + $0xc8] sm:$0xff] %vm676, %v669
          %703 = vst.msk [vmem:[#allocation3 + $0xd0] sm:$0xff] %vm676, %v670
          %704 = vst.msk [vmem:[#allocation3 + $0xd8] sm:$0xff] %vm676, %v671
          %705 = vst.msk [vmem:[#allocation3 + $0xe0] sm:$0xff] %vm676, %v672
          %706 = vst.msk [vmem:[#allocation3 + $0xe8] sm:$0xff] %vm676, %v673
          %707 = vst.msk [vmem:[#allocation3 + $0xf0] sm:$0xff] %vm676, %v674
          %708 = vst.msk [vmem:[#allocation3 + $0xf8] sm:$0xff] %vm676, %v675
          %v709 = vstv %s380
          %v710 = vadd.f32 %v709, 0.0
          %711 = vst [vmem:[%s303] sm:$0xff] %v710
          %v712 = vsel %vm515, %v356, 0.0
          %v713 = vsel %vm515, %v357, 0.0
          %v714 = vadd.f32 %v712, %v713
          %715 = vadd.xlane.f32.xlu0 %v714
          %v716 = vpop.xlane.xlu0 %715
          %v717 = vrot.slane %v716, 4
          %v718 = vadd.f32 %v716, %v717
          %v719 = vrot.slane %v718, 2
          %v720 = vadd.f32 %v718, %v719
          %v721 = vrot.slane %v720, 1
          %v722 = vadd.f32 %v720, %v721
          %s723 = vtos %v722
          %v724 = vstv %s723
          %v725 = vadd.f32 %v724, 0.0
          %726 = vst [vmem:[%s317] sm:$0xff] %v725
          %727 = vst [vmem:[%s310] sm:$0xff] 0.0
        $region40: #{tpu_custom_call.1} parent=35 // pred_fallthru
          _
        %s728 = smul.u32 %s29, 128
        %s729 = scalar_lea.vmem [#allocation3], %s728
        %v730 = vld [vmem:[%s729] sm:$0xff]
        %v731 = vld [vmem:[%s729 + $0x8] sm:$0xff]
        %v732 = vld [vmem:[%s729 + $0x10] sm:$0xff]
        %v733 = vld [vmem:[%s729 + $0x18] sm:$0xff]
        %v734 = vld [vmem:[%s729 + $0x20] sm:$0xff]
        %v735 = vld [vmem:[%s729 + $0x28] sm:$0xff]
        %v736 = vld [vmem:[%s729 + $0x30] sm:$0xff]
        %v737 = vld [vmem:[%s729 + $0x38] sm:$0xff]
        %v738 = vld [vmem:[%s729 + $0x40] sm:$0xff]
        %v739 = vld [vmem:[%s729 + $0x48] sm:$0xff]
        %v740 = vld [vmem:[%s729 + $0x50] sm:$0xff]
        %v741 = vld [vmem:[%s729 + $0x58] sm:$0xff]
        %v742 = vld [vmem:[%s729 + $0x60] sm:$0xff]
        %v743 = vld [vmem:[%s729 + $0x68] sm:$0xff]
        %v744 = vld [vmem:[%s729 + $0x70] sm:$0xff]
        %v745 = vld [vmem:[%s729 + $0x78] sm:$0xff]
        %vm746 = vcmp.gt.f32.partialorder %v730, 0.5
        %vm747 = vcmp.gt.f32.partialorder %v731, 0.5
        %vm748 = vcmp.gt.f32.partialorder %v732, 0.5
        %vm749 = vcmp.gt.f32.partialorder %v733, 0.5
        %vm750 = vcmp.gt.f32.partialorder %v734, 0.5
        %vm751 = vcmp.gt.f32.partialorder %v735, 0.5
        %vm752 = vcmp.gt.f32.partialorder %v736, 0.5
        %vm753 = vcmp.gt.f32.partialorder %v737, 0.5
        %vm754 = vcmp.gt.f32.partialorder %v738, 0.5
        %vm755 = vcmp.gt.f32.partialorder %v739, 0.5
        %vm756 = vcmp.gt.f32.partialorder %v740, 0.5
        %vm757 = vcmp.gt.f32.partialorder %v741, 0.5
        %vm758 = vcmp.gt.f32.partialorder %v742, 0.5
        %vm759 = vcmp.gt.f32.partialorder %v743, 0.5
        %vm760 = vcmp.gt.f32.partialorder %v744, 0.5
        %vm761 = vcmp.gt.f32.partialorder %v745, 0.5
        %v762 = vld [vmem:[#allocation2] sm:$0x3]
        %v763 = vlaneseq
        %v764 = vshrl.u32 %v763, 7
        %v765 = vadd.s32 %v764, 8
        %v766 = vadd.s32 %v764, 16
        %v767 = vadd.s32 %v764, 24
        %v768 = vadd.s32 %v764, 32
        %v769 = vadd.s32 %v764, 40
        %v770 = vadd.s32 %v764, 48
        %v771 = vadd.s32 %v764, 56
        %v772 = vadd.s32 %v764, 64
        %v773 = vadd.s32 %v764, 72
        %v774 = vadd.s32 %v764, 80
        %v775 = vadd.s32 %v764, 88
        %v776 = vadd.s32 %v764, 96
        %v777 = vadd.s32 %v764, 104
        %v778 = vadd.s32 %v764, 112
        %v779 = vadd.s32 %v764, 120
        %v780 = vstv %s728
        %v781 = vadd.s32 %v764, %v780
        %v782 = vadd.s32 %v765, %v780
        %v783 = vadd.s32 %v766, %v780
        %v784 = vadd.s32 %v767, %v780
        %v785 = vadd.s32 %v768, %v780
        %v786 = vadd.s32 %v769, %v780
        %v787 = vadd.s32 %v770, %v780
        %v788 = vadd.s32 %v771, %v780
        %v789 = vadd.s32 %v772, %v780
        %v790 = vadd.s32 %v773, %v780
        %v791 = vadd.s32 %v774, %v780
        %v792 = vadd.s32 %v775, %v780
        %v793 = vadd.s32 %v776, %v780
        %v794 = vadd.s32 %v777, %v780
        %v795 = vadd.s32 %v778, %v780
        %v796 = vadd.s32 %v779, %v780
        %v797 = vlaneseq
        %v798 = vand.u32 %v797, 127
        %v799 = vadd.s32 %v798, 128
        %v801 = vperm.slane %v762, 0
        %v802 = vperm.slane %v762, 1
        %806 = vset.pattern.permute.xlu0 0
        %807 = vperm.xlu0 %806, %v730
        %v808 = vpop.permute.xlu0 %807
        %811 = vset.pattern.permute.xlu0 0
        %812 = vperm.xlu0 %811, %v731
        %v813 = vpop.permute.xlu0 %812
        %816 = vset.pattern.permute.xlu0 0
        %817 = vperm.xlu0 %816, %v732
        %v818 = vpop.permute.xlu0 %817
        %821 = vset.pattern.permute.xlu0 0
        %822 = vperm.xlu0 %821, %v733
        %v823 = vpop.permute.xlu0 %822
        %826 = vset.pattern.permute.xlu0 0
        %827 = vperm.xlu0 %826, %v734
        %v828 = vpop.permute.xlu0 %827
        %831 = vset.pattern.permute.xlu0 0
        %832 = vperm.xlu0 %831, %v735
        %v833 = vpop.permute.xlu0 %832
        %836 = vset.pattern.permute.xlu0 0
        %837 = vperm.xlu0 %836, %v736
        %v838 = vpop.permute.xlu0 %837
        %841 = vset.pattern.permute.xlu0 0
        %842 = vperm.xlu0 %841, %v737
        %v843 = vpop.permute.xlu0 %842
        %846 = vset.pattern.permute.xlu0 0
        %847 = vperm.xlu0 %846, %v738
        %v848 = vpop.permute.xlu0 %847
        %851 = vset.pattern.permute.xlu0 0
        %852 = vperm.xlu0 %851, %v739
        %v853 = vpop.permute.xlu0 %852
        %856 = vset.pattern.permute.xlu0 0
        %857 = vperm.xlu0 %856, %v740
        %v858 = vpop.permute.xlu0 %857
        %861 = vset.pattern.permute.xlu0 0
        %862 = vperm.xlu0 %861, %v741
        %v863 = vpop.permute.xlu0 %862
        %866 = vset.pattern.permute.xlu0 0
        %867 = vperm.xlu0 %866, %v742
        %v868 = vpop.permute.xlu0 %867
        %871 = vset.pattern.permute.xlu0 0
        %872 = vperm.xlu0 %871, %v743
        %v873 = vpop.permute.xlu0 %872
        %876 = vset.pattern.permute.xlu0 0
        %877 = vperm.xlu0 %876, %v744
        %v878 = vpop.permute.xlu0 %877
        %881 = vset.pattern.permute.xlu0 0
        %882 = vperm.xlu0 %881, %v745
        %v883 = vpop.permute.xlu0 %882
        %vm885 = vcmp.gt.f32.partialorder %v801, %v808
        %vm886 = vcmp.gt.f32.partialorder %v802, %v808
        %vm887 = vcmp.gt.f32.partialorder %v801, %v813
        %vm888 = vcmp.gt.f32.partialorder %v802, %v813
        %vm889 = vcmp.gt.f32.partialorder %v801, %v818
        %vm890 = vcmp.gt.f32.partialorder %v802, %v818
        %vm891 = vcmp.gt.f32.partialorder %v801, %v823
        %vm892 = vcmp.gt.f32.partialorder %v802, %v823
        %vm893 = vcmp.gt.f32.partialorder %v801, %v828
        %vm894 = vcmp.gt.f32.partialorder %v802, %v828
        %vm895 = vcmp.gt.f32.partialorder %v801, %v833
        %vm896 = vcmp.gt.f32.partialorder %v802, %v833
        %vm897 = vcmp.gt.f32.partialorder %v801, %v838
        %vm898 = vcmp.gt.f32.partialorder %v802, %v838
        %vm899 = vcmp.gt.f32.partialorder %v801, %v843
        %vm900 = vcmp.gt.f32.partialorder %v802, %v843
        %vm901 = vcmp.gt.f32.partialorder %v801, %v848
        %vm902 = vcmp.gt.f32.partialorder %v802, %v848
        %vm903 = vcmp.gt.f32.partialorder %v801, %v853
        %vm904 = vcmp.gt.f32.partialorder %v802, %v853
        %vm905 = vcmp.gt.f32.partialorder %v801, %v858
        %vm906 = vcmp.gt.f32.partialorder %v802, %v858
        %vm907 = vcmp.gt.f32.partialorder %v801, %v863
        %vm908 = vcmp.gt.f32.partialorder %v802, %v863
        %vm909 = vcmp.gt.f32.partialorder %v801, %v868
        %vm910 = vcmp.gt.f32.partialorder %v802, %v868
        %vm911 = vcmp.gt.f32.partialorder %v801, %v873
        %vm912 = vcmp.gt.f32.partialorder %v802, %v873
        %vm913 = vcmp.gt.f32.partialorder %v801, %v878
        %vm914 = vcmp.gt.f32.partialorder %v802, %v878
        %vm915 = vcmp.gt.f32.partialorder %v801, %v883
        %vm916 = vcmp.gt.f32.partialorder %v802, %v883
        %vm917 = vcmp.eq.f32.partialorder %v801, %v808
        %vm918 = vcmp.eq.f32.partialorder %v802, %v808
        %vm919 = vcmp.eq.f32.partialorder %v801, %v813
        %vm920 = vcmp.eq.f32.partialorder %v802, %v813
        %vm921 = vcmp.eq.f32.partialorder %v801, %v818
        %vm922 = vcmp.eq.f32.partialorder %v802, %v818
        %vm923 = vcmp.eq.f32.partialorder %v801, %v823
        %vm924 = vcmp.eq.f32.partialorder %v802, %v823
        %vm925 = vcmp.eq.f32.partialorder %v801, %v828
        %vm926 = vcmp.eq.f32.partialorder %v802, %v828
        %vm927 = vcmp.eq.f32.partialorder %v801, %v833
        %vm928 = vcmp.eq.f32.partialorder %v802, %v833
        %vm929 = vcmp.eq.f32.partialorder %v801, %v838
        %vm930 = vcmp.eq.f32.partialorder %v802, %v838
        %vm931 = vcmp.eq.f32.partialorder %v801, %v843
        %vm932 = vcmp.eq.f32.partialorder %v802, %v843
        %vm933 = vcmp.eq.f32.partialorder %v801, %v848
        %vm934 = vcmp.eq.f32.partialorder %v802, %v848
        %vm935 = vcmp.eq.f32.partialorder %v801, %v853
        %vm936 = vcmp.eq.f32.partialorder %v802, %v853
        %vm937 = vcmp.eq.f32.partialorder %v801, %v858
        %vm938 = vcmp.eq.f32.partialorder %v802, %v858
        %vm939 = vcmp.eq.f32.partialorder %v801, %v863
        %vm940 = vcmp.eq.f32.partialorder %v802, %v863
        %vm941 = vcmp.eq.f32.partialorder %v801, %v868
        %vm942 = vcmp.eq.f32.partialorder %v802, %v868
        %vm943 = vcmp.eq.f32.partialorder %v801, %v873
        %vm944 = vcmp.eq.f32.partialorder %v802, %v873
        %vm945 = vcmp.eq.f32.partialorder %v801, %v878
        %vm946 = vcmp.eq.f32.partialorder %v802, %v878
        %vm947 = vcmp.eq.f32.partialorder %v801, %v883
        %vm948 = vcmp.eq.f32.partialorder %v802, %v883
        %vm949 = vcmp.lt.s32.totalorder %v798, %v781
        %vm950 = vcmp.lt.s32.totalorder %v799, %v781
        %vm951 = vcmp.lt.s32.totalorder %v798, %v782
        %vm952 = vcmp.lt.s32.totalorder %v799, %v782
        %vm953 = vcmp.lt.s32.totalorder %v798, %v783
        %vm954 = vcmp.lt.s32.totalorder %v799, %v783
        %vm955 = vcmp.lt.s32.totalorder %v798, %v784
        %vm956 = vcmp.lt.s32.totalorder %v799, %v784
        %vm957 = vcmp.lt.s32.totalorder %v798, %v785
        %vm958 = vcmp.lt.s32.totalorder %v799, %v785
        %vm959 = vcmp.lt.s32.totalorder %v798, %v786
        %vm960 = vcmp.lt.s32.totalorder %v799, %v786
        %vm961 = vcmp.lt.s32.totalorder %v798, %v787
        %vm962 = vcmp.lt.s32.totalorder %v799, %v787
        %vm963 = vcmp.lt.s32.totalorder %v798, %v788
        %vm964 = vcmp.lt.s32.totalorder %v799, %v788
        %vm965 = vcmp.lt.s32.totalorder %v798, %v789
        %vm966 = vcmp.lt.s32.totalorder %v799, %v789
        %vm967 = vcmp.lt.s32.totalorder %v798, %v790
        %vm968 = vcmp.lt.s32.totalorder %v799, %v790
        %vm969 = vcmp.lt.s32.totalorder %v798, %v791
        %vm970 = vcmp.lt.s32.totalorder %v799, %v791
        %vm971 = vcmp.lt.s32.totalorder %v798, %v792
        %vm972 = vcmp.lt.s32.totalorder %v799, %v792
        %vm973 = vcmp.lt.s32.totalorder %v798, %v793
        %vm974 = vcmp.lt.s32.totalorder %v799, %v793
        %vm975 = vcmp.lt.s32.totalorder %v798, %v794
        %vm976 = vcmp.lt.s32.totalorder %v799, %v794
        %vm977 = vcmp.lt.s32.totalorder %v798, %v795
        %vm978 = vcmp.lt.s32.totalorder %v799, %v795
        %vm979 = vcmp.lt.s32.totalorder %v798, %v796
        %vm980 = vcmp.lt.s32.totalorder %v799, %v796
        %vm981 = vmand %vm917, %vm949
        %vm982 = vmand %vm918, %vm950
        %vm983 = vmand %vm919, %vm951
        %vm984 = vmand %vm920, %vm952
        %vm985 = vmand %vm921, %vm953
        %vm986 = vmand %vm922, %vm954
        %vm987 = vmand %vm923, %vm955
        %vm988 = vmand %vm924, %vm956
        %vm989 = vmand %vm925, %vm957
        %vm990 = vmand %vm926, %vm958
        %vm991 = vmand %vm927, %vm959
        %vm992 = vmand %vm928, %vm960
        %vm993 = vmand %vm929, %vm961
        %vm994 = vmand %vm930, %vm962
        %vm995 = vmand %vm931, %vm963
        %vm996 = vmand %vm932, %vm964
        %vm997 = vmand %vm933, %vm965
        %vm998 = vmand %vm934, %vm966
        %vm999 = vmand %vm935, %vm967
        %vm1000 = vmand %vm936, %vm968
        %vm1001 = vmand %vm937, %vm969
        %vm1002 = vmand %vm938, %vm970
        %vm1003 = vmand %vm939, %vm971
        %vm1004 = vmand %vm940, %vm972
        %vm1005 = vmand %vm941, %vm973
        %vm1006 = vmand %vm942, %vm974
        %vm1007 = vmand %vm943, %vm975
        %vm1008 = vmand %vm944, %vm976
        %vm1009 = vmand %vm945, %vm977
        %vm1010 = vmand %vm946, %vm978
        %vm1011 = vmand %vm947, %vm979
        %vm1012 = vmand %vm948, %vm980
        %vm1013 = vmor %vm885, %vm981
        %vm1014 = vmor %vm886, %vm982
        %vm1015 = vmor %vm887, %vm983
        %vm1016 = vmor %vm888, %vm984
        %vm1017 = vmor %vm889, %vm985
        %vm1018 = vmor %vm890, %vm986
        %vm1019 = vmor %vm891, %vm987
        %vm1020 = vmor %vm892, %vm988
        %vm1021 = vmor %vm893, %vm989
        %vm1022 = vmor %vm894, %vm990
        %vm1023 = vmor %vm895, %vm991
        %vm1024 = vmor %vm896, %vm992
        %vm1025 = vmor %vm897, %vm993
        %vm1026 = vmor %vm898, %vm994
        %vm1027 = vmor %vm899, %vm995
        %vm1028 = vmor %vm900, %vm996
        %vm1029 = vmor %vm901, %vm997
        %vm1030 = vmor %vm902, %vm998
        %vm1031 = vmor %vm903, %vm999
        %vm1032 = vmor %vm904, %vm1000
        %vm1033 = vmor %vm905, %vm1001
        %vm1034 = vmor %vm906, %vm1002
        %vm1035 = vmor %vm907, %vm1003
        %vm1036 = vmor %vm908, %vm1004
        %vm1037 = vmor %vm909, %vm1005
        %vm1038 = vmor %vm910, %vm1006
        %vm1039 = vmor %vm911, %vm1007
        %vm1040 = vmor %vm912, %vm1008
        %vm1041 = vmor %vm913, %vm1009
        %vm1042 = vmor %vm914, %vm1010
        %vm1043 = vmor %vm915, %vm1011
        %vm1044 = vmor %vm916, %vm1012
        %v1045 = vsel %vm1013, 1, 0
        %v1046 = vsel %vm1014, 1, 0
        %v1047 = vsel %vm1015, 1, 0
        %v1048 = vsel %vm1016, 1, 0
        %v1049 = vsel %vm1017, 1, 0
        %v1050 = vsel %vm1018, 1, 0
        %v1051 = vsel %vm1019, 1, 0
        %v1052 = vsel %vm1020, 1, 0
        %v1053 = vsel %vm1021, 1, 0
        %v1054 = vsel %vm1022, 1, 0
        %v1055 = vsel %vm1023, 1, 0
        %v1056 = vsel %vm1024, 1, 0
        %v1057 = vsel %vm1025, 1, 0
        %v1058 = vsel %vm1026, 1, 0
        %v1059 = vsel %vm1027, 1, 0
        %v1060 = vsel %vm1028, 1, 0
        %v1061 = vsel %vm1029, 1, 0
        %v1062 = vsel %vm1030, 1, 0
        %v1063 = vsel %vm1031, 1, 0
        %v1064 = vsel %vm1032, 1, 0
        %v1065 = vsel %vm1033, 1, 0
        %v1066 = vsel %vm1034, 1, 0
        %v1067 = vsel %vm1035, 1, 0
        %v1068 = vsel %vm1036, 1, 0
        %v1069 = vsel %vm1037, 1, 0
        %v1070 = vsel %vm1038, 1, 0
        %v1071 = vsel %vm1039, 1, 0
        %v1072 = vsel %vm1040, 1, 0
        %v1073 = vsel %vm1041, 1, 0
        %v1074 = vsel %vm1042, 1, 0
        %v1075 = vsel %vm1043, 1, 0
        %v1076 = vsel %vm1044, 1, 0
        %v1077 = vcvt.s32.f32 %v1045
        %v1078 = vcvt.s32.f32 %v1046
        %v1079 = vcvt.s32.f32 %v1047
        %v1080 = vcvt.s32.f32 %v1048
        %v1081 = vcvt.s32.f32 %v1049
        %v1082 = vcvt.s32.f32 %v1050
        %v1083 = vcvt.s32.f32 %v1051
        %v1084 = vcvt.s32.f32 %v1052
        %v1085 = vcvt.s32.f32 %v1053
        %v1086 = vcvt.s32.f32 %v1054
        %v1087 = vcvt.s32.f32 %v1055
        %v1088 = vcvt.s32.f32 %v1056
        %v1089 = vcvt.s32.f32 %v1057
        %v1090 = vcvt.s32.f32 %v1058
        %v1091 = vcvt.s32.f32 %v1059
        %v1092 = vcvt.s32.f32 %v1060
        %v1093 = vcvt.s32.f32 %v1061
        %v1094 = vcvt.s32.f32 %v1062
        %v1095 = vcvt.s32.f32 %v1063
        %v1096 = vcvt.s32.f32 %v1064
        %v1097 = vcvt.s32.f32 %v1065
        %v1098 = vcvt.s32.f32 %v1066
        %v1099 = vcvt.s32.f32 %v1067
        %v1100 = vcvt.s32.f32 %v1068
        %v1101 = vcvt.s32.f32 %v1069
        %v1102 = vcvt.s32.f32 %v1070
        %v1103 = vcvt.s32.f32 %v1071
        %v1104 = vcvt.s32.f32 %v1072
        %v1105 = vcvt.s32.f32 %v1073
        %v1106 = vcvt.s32.f32 %v1074
        %v1107 = vcvt.s32.f32 %v1075
        %v1108 = vcvt.s32.f32 %v1076
        %v1109 = vpack.c.bf16 %v1079, %v1077
        %v1110 = vpack.c.bf16 %v1080, %v1078
        %v1111 = vpack.c.bf16 %v1083, %v1081
        %v1112 = vpack.c.bf16 %v1084, %v1082
        %v1113 = vpack.c.bf16 %v1087, %v1085
        %v1114 = vpack.c.bf16 %v1088, %v1086
        %v1115 = vpack.c.bf16 %v1091, %v1089
        %v1116 = vpack.c.bf16 %v1092, %v1090
        %v1117 = vpack.c.bf16 %v1095, %v1093
        %v1118 = vpack.c.bf16 %v1096, %v1094
        %v1119 = vpack.c.bf16 %v1099, %v1097
        %v1120 = vpack.c.bf16 %v1100, %v1098
        %v1121 = vpack.c.bf16 %v1103, %v1101
        %v1122 = vpack.c.bf16 %v1104, %v1102
        %v1123 = vpack.c.bf16 %v1107, %v1105
        %v1124 = vpack.c.bf16 %v1108, %v1106
        %1125 = vmatpush.bf16.msra.mxu0 1065369472
        %1126 = vmatpush.bf16.msra.mxu0 1065369472
        %1127 = vmatpush.bf16.msra.mxu0 1065369472
        %1128 = vmatpush.bf16.msra.mxu0 1065369472
        %1129 = vmatpush.bf16.msra.mxu0 1065369472
        %1130 = vmatpush.bf16.msra.mxu0 1065369472
        %1131 = vmatpush.bf16.msra.mxu0 1065369472
        %1132 = vmatpush.bf16.msra.mxu0 1065369472
        %1133 = vmatmul.bf16.gmra.mxu0 %v1109
        %v1134 = vpop.f32.mrf.mxu0
        %v1135 = vadd.f32 0.0, %v1134
        %v1136 = vpop.f32.mrf.mxu0
        %v1137 = vadd.f32 0.0, %v1136
        %1138 = vmatmul.bf16.gmra.mxu0 %v1111
        %v1139 = vpop.f32.mrf.mxu0
        %v1140 = vadd.f32 0.0, %v1139
        %v1141 = vpop.f32.mrf.mxu0
        %v1142 = vadd.f32 0.0, %v1141
        %1143 = vmatmul.bf16.gmra.mxu0 %v1113
        %v1144 = vpop.f32.mrf.mxu0
        %v1145 = vadd.f32 0.0, %v1144
        %v1146 = vpop.f32.mrf.mxu0
        %v1147 = vadd.f32 0.0, %v1146
        %1148 = vmatmul.bf16.gmra.mxu0 %v1115
        %v1149 = vpop.f32.mrf.mxu0
        %v1150 = vadd.f32 0.0, %v1149
        %v1151 = vpop.f32.mrf.mxu0
        %v1152 = vadd.f32 0.0, %v1151
        %1153 = vmatmul.bf16.gmra.mxu0 %v1117
        %v1154 = vpop.f32.mrf.mxu0
        %v1155 = vadd.f32 0.0, %v1154
        %v1156 = vpop.f32.mrf.mxu0
        %v1157 = vadd.f32 0.0, %v1156
        %1158 = vmatmul.bf16.gmra.mxu0 %v1119
        %v1159 = vpop.f32.mrf.mxu0
        %v1160 = vadd.f32 0.0, %v1159
        %v1161 = vpop.f32.mrf.mxu0
        %v1162 = vadd.f32 0.0, %v1161
        %1163 = vmatmul.bf16.gmra.mxu0 %v1121
        %v1164 = vpop.f32.mrf.mxu0
        %v1165 = vadd.f32 0.0, %v1164
        %v1166 = vpop.f32.mrf.mxu0
        %v1167 = vadd.f32 0.0, %v1166
        %1168 = vmatmul.bf16.gmra.mxu0 %v1123
        %v1169 = vpop.f32.mrf.mxu0
        %v1170 = vadd.f32 0.0, %v1169
        %v1171 = vpop.f32.mrf.mxu0
        %v1172 = vadd.f32 0.0, %v1171
        %1173 = vdwg.mxu0
        %1174 = vmatpush.bf16.msra.mxu0 1065369472
        %1175 = vmatpush.bf16.msra.mxu0 1065369472
        %1176 = vmatpush.bf16.msra.mxu0 1065369472
        %1177 = vmatpush.bf16.msra.mxu0 1065369472
        %1178 = vmatpush.bf16.msra.mxu0 1065369472
        %1179 = vmatpush.bf16.msra.mxu0 1065369472
        %1180 = vmatpush.bf16.msra.mxu0 1065369472
        %1181 = vmatpush.bf16.msra.mxu0 1065369472
        %1182 = vmatmul.bf16.gmra.mxu0 %v1110
        %v1183 = vpop.f32.mrf.mxu0
        %v1184 = vadd.f32 %v1135, %v1183
        %v1185 = vpop.f32.mrf.mxu0
        %v1186 = vadd.f32 %v1137, %v1185
        %1187 = vmatmul.bf16.gmra.mxu0 %v1112
        %v1188 = vpop.f32.mrf.mxu0
        %v1189 = vadd.f32 %v1140, %v1188
        %v1190 = vpop.f32.mrf.mxu0
        %v1191 = vadd.f32 %v1142, %v1190
        %1192 = vmatmul.bf16.gmra.mxu0 %v1114
        %v1193 = vpop.f32.mrf.mxu0
        %v1194 = vadd.f32 %v1145, %v1193
        %v1195 = vpop.f32.mrf.mxu0
        %v1196 = vadd.f32 %v1147, %v1195
        %1197 = vmatmul.bf16.gmra.mxu0 %v1116
        %v1198 = vpop.f32.mrf.mxu0
        %v1199 = vadd.f32 %v1150, %v1198
        %v1200 = vpop.f32.mrf.mxu0
        %v1201 = vadd.f32 %v1152, %v1200
        %1202 = vmatmul.bf16.gmra.mxu0 %v1118
        %v1203 = vpop.f32.mrf.mxu0
        %v1204 = vadd.f32 %v1155, %v1203
        %v1205 = vpop.f32.mrf.mxu0
        %v1206 = vadd.f32 %v1157, %v1205
        %1207 = vmatmul.bf16.gmra.mxu0 %v1120
        %v1208 = vpop.f32.mrf.mxu0
        %v1209 = vadd.f32 %v1160, %v1208
        %v1210 = vpop.f32.mrf.mxu0
        %v1211 = vadd.f32 %v1162, %v1210
        %1212 = vmatmul.bf16.gmra.mxu0 %v1122
        %v1213 = vpop.f32.mrf.mxu0
        %v1214 = vadd.f32 %v1165, %v1213
        %v1215 = vpop.f32.mrf.mxu0
        %v1216 = vadd.f32 %v1167, %v1215
        %1217 = vmatmul.bf16.gmra.mxu0 %v1124
        %v1218 = vpop.f32.mrf.mxu0
        %v1219 = vadd.f32 %v1170, %v1218
        %v1220 = vpop.f32.mrf.mxu0
        %v1221 = vadd.f32 %v1172, %v1220
        %1222 = vdwg.mxu0
        %v1224 = vperm.slane %v341, 0
        %v1225 = vperm.slane %v341, 1
        %vm1228 = vcmask 1040384
        %v1229 = vsel %vm1228, %v1224, 0.0
        %v1230 = vsel %vm1228, %v1225, 0.0
        %v1231 = vadd.f32 %v1229, %v1230
        %1232 = vadd.xlane.f32.xlu0 %v1231
        %v1233 = vpop.xlane.xlu0 %1232
        %v1234 = vrot.slane %v1233, 4
        %v1235 = vadd.f32 %v1233, %v1234
        %v1236 = vrot.slane %v1235, 2
        %v1237 = vadd.f32 %v1235, %v1236
        %v1238 = vrot.slane %v1237, 1
        %v1239 = vadd.f32 %v1237, %v1238
        %s1240 = vtos %v1239
        %s1241 = smul.f32 %s1240, 3.0
        %s1242 = smin.f32 %s1241, 199.0
        %v1243 = vstv %s1242
        %vm1244 = vcmp.lt.f32.partialorder %v1184, %v1243
        %vm1245 = vcmp.lt.f32.partialorder %v1186, %v1243
        %vm1246 = vcmp.lt.f32.partialorder %v1189, %v1243
        %vm1247 = vcmp.lt.f32.partialorder %v1191, %v1243
        %vm1248 = vcmp.lt.f32.partialorder %v1194, %v1243
        %vm1249 = vcmp.lt.f32.partialorder %v1196, %v1243
        %vm1250 = vcmp.lt.f32.partialorder %v1199, %v1243
        %vm1251 = vcmp.lt.f32.partialorder %v1201, %v1243
        %vm1252 = vcmp.lt.f32.partialorder %v1204, %v1243
        %vm1253 = vcmp.lt.f32.partialorder %v1206, %v1243
        %vm1254 = vcmp.lt.f32.partialorder %v1209, %v1243
        %vm1255 = vcmp.lt.f32.partialorder %v1211, %v1243
        %vm1256 = vcmp.lt.f32.partialorder %v1214, %v1243
        %vm1257 = vcmp.lt.f32.partialorder %v1216, %v1243
        %vm1258 = vcmp.lt.f32.partialorder %v1219, %v1243
        %vm1259 = vcmp.lt.f32.partialorder %v1221, %v1243
        %v1260 = vsel %vm1244, 1, 0
        %v1261 = vsel %vm1245, 1, 0
        %v1262 = vsel %vm1246, 1, 0
        %v1263 = vsel %vm1247, 1, 0
        %v1264 = vsel %vm1248, 1, 0
        %v1265 = vsel %vm1249, 1, 0
        %v1266 = vsel %vm1250, 1, 0
        %v1267 = vsel %vm1251, 1, 0
        %v1268 = vsel %vm1252, 1, 0
        %v1269 = vsel %vm1253, 1, 0
        %v1270 = vsel %vm1254, 1, 0
        %v1271 = vsel %vm1255, 1, 0
        %v1272 = vsel %vm1256, 1, 0
        %v1273 = vsel %vm1257, 1, 0
        %v1274 = vsel %vm1258, 1, 0
        %v1275 = vsel %vm1259, 1, 0
        %1276 = vrot.lane.b32.xlu0 %v1260, 2
        %v1277 = vpop.permute.xlu0 %1276
        %1278 = vrot.lane.b32.xlu0 %v1261, 2
        %v1279 = vpop.permute.xlu0 %1278
        %1280 = vrot.lane.b32.xlu0 %v1262, 2
        %v1281 = vpop.permute.xlu0 %1280
        %1282 = vrot.lane.b32.xlu0 %v1263, 2
        %v1283 = vpop.permute.xlu0 %1282
        %1284 = vrot.lane.b32.xlu0 %v1264, 2
        %v1285 = vpop.permute.xlu0 %1284
        %1286 = vrot.lane.b32.xlu0 %v1265, 2
        %v1287 = vpop.permute.xlu0 %1286
        %1288 = vrot.lane.b32.xlu0 %v1266, 2
        %v1289 = vpop.permute.xlu0 %1288
        %1290 = vrot.lane.b32.xlu0 %v1267, 2
        %v1291 = vpop.permute.xlu0 %1290
        %1292 = vrot.lane.b32.xlu0 %v1268, 2
        %v1293 = vpop.permute.xlu0 %1292
        %1294 = vrot.lane.b32.xlu0 %v1269, 2
        %v1295 = vpop.permute.xlu0 %1294
        %1296 = vrot.lane.b32.xlu0 %v1270, 2
        %v1297 = vpop.permute.xlu0 %1296
        %1298 = vrot.lane.b32.xlu0 %v1271, 2
        %v1299 = vpop.permute.xlu0 %1298
        %1300 = vrot.lane.b32.xlu0 %v1272, 2
        %v1301 = vpop.permute.xlu0 %1300
        %1302 = vrot.lane.b32.xlu0 %v1273, 2
        %v1303 = vpop.permute.xlu0 %1302
        %1304 = vrot.lane.b32.xlu0 %v1274, 2
        %v1305 = vpop.permute.xlu0 %1304
        %1306 = vrot.lane.b32.xlu0 %v1275, 2
        %v1307 = vpop.permute.xlu0 %1306
        %vm1308 = vcmp.ne.s32.totalorder %v1277, 0
        %vm1309 = vcmp.ne.s32.totalorder %v1279, 0
        %vm1310 = vcmp.ne.s32.totalorder %v1281, 0
        %vm1311 = vcmp.ne.s32.totalorder %v1283, 0
        %vm1312 = vcmp.ne.s32.totalorder %v1285, 0
        %vm1313 = vcmp.ne.s32.totalorder %v1287, 0
        %vm1314 = vcmp.ne.s32.totalorder %v1289, 0
        %vm1315 = vcmp.ne.s32.totalorder %v1291, 0
        %vm1316 = vcmp.ne.s32.totalorder %v1293, 0
        %vm1317 = vcmp.ne.s32.totalorder %v1295, 0
        %vm1318 = vcmp.ne.s32.totalorder %v1297, 0
        %vm1319 = vcmp.ne.s32.totalorder %v1299, 0
        %vm1320 = vcmp.ne.s32.totalorder %v1301, 0
        %vm1321 = vcmp.ne.s32.totalorder %v1303, 0
        %vm1322 = vcmp.ne.s32.totalorder %v1305, 0
        %vm1323 = vcmp.ne.s32.totalorder %v1307, 0
        %vm1324 = vmor %vm746, %vm1308
        %vm1325 = vmor %vm747, %vm1309
        %vm1326 = vmor %vm748, %vm1310
        %vm1327 = vmor %vm749, %vm1311
        %vm1328 = vmor %vm750, %vm1312
        %vm1329 = vmor %vm751, %vm1313
        %vm1330 = vmor %vm752, %vm1314
        %vm1331 = vmor %vm753, %vm1315
        %vm1332 = vmor %vm754, %vm1316
        %vm1333 = vmor %vm755, %vm1317
        %vm1334 = vmor %vm756, %vm1318
        %vm1335 = vmor %vm757, %vm1319
        %vm1336 = vmor %vm758, %vm1320
        %vm1337 = vmor %vm759, %vm1321
        %vm1338 = vmor %vm760, %vm1322
        %vm1339 = vmor %vm761, %vm1323
        %v1340 = vsel %vm1324, 1, 0
        %v1341 = vsel %vm1325, 1, 0
        %v1342 = vsel %vm1326, 1, 0
        %v1343 = vsel %vm1327, 1, 0
        %v1344 = vsel %vm1328, 1, 0
        %v1345 = vsel %vm1329, 1, 0
        %v1346 = vsel %vm1330, 1, 0
        %v1347 = vsel %vm1331, 1, 0
        %v1348 = vsel %vm1332, 1, 0
        %v1349 = vsel %vm1333, 1, 0
        %v1350 = vsel %vm1334, 1, 0
        %v1351 = vsel %vm1335, 1, 0
        %v1352 = vsel %vm1336, 1, 0
        %v1353 = vsel %vm1337, 1, 0
        %v1354 = vsel %vm1338, 1, 0
        %v1355 = vsel %vm1339, 1, 0
        %v1356 = vcvt.s32.f32 %v1340
        %v1357 = vcvt.s32.f32 %v1341
        %v1358 = vcvt.s32.f32 %v1342
        %v1359 = vcvt.s32.f32 %v1343
        %v1360 = vcvt.s32.f32 %v1344
        %v1361 = vcvt.s32.f32 %v1345
        %v1362 = vcvt.s32.f32 %v1346
        %v1363 = vcvt.s32.f32 %v1347
        %v1364 = vcvt.s32.f32 %v1348
        %v1365 = vcvt.s32.f32 %v1349
        %v1366 = vcvt.s32.f32 %v1350
        %v1367 = vcvt.s32.f32 %v1351
        %v1368 = vcvt.s32.f32 %v1352
        %v1369 = vcvt.s32.f32 %v1353
        %v1370 = vcvt.s32.f32 %v1354
        %v1371 = vcvt.s32.f32 %v1355
        %v1372 = vld [vmem:[%s310] sm:$0xff]
        %1389 = vrot.lane.b32.xlu0 %v1356, 127
        %v1390 = vpop.permute.xlu0 %1389
        %1391 = vrot.lane.b32.xlu0 %v1357, 127
        %v1392 = vpop.permute.xlu0 %1391
        %1393 = vrot.lane.b32.xlu0 %v1358, 127
        %v1394 = vpop.permute.xlu0 %1393
        %1395 = vrot.lane.b32.xlu0 %v1359, 127
        %v1396 = vpop.permute.xlu0 %1395
        %1397 = vrot.lane.b32.xlu0 %v1360, 127
        %v1398 = vpop.permute.xlu0 %1397
        %1399 = vrot.lane.b32.xlu0 %v1361, 127
        %v1400 = vpop.permute.xlu0 %1399
        %1401 = vrot.lane.b32.xlu0 %v1362, 127
        %v1402 = vpop.permute.xlu0 %1401
        %1403 = vrot.lane.b32.xlu0 %v1363, 127
        %v1404 = vpop.permute.xlu0 %1403
        %1405 = vrot.lane.b32.xlu0 %v1364, 127
        %v1406 = vpop.permute.xlu0 %1405
        %1407 = vrot.lane.b32.xlu0 %v1365, 127
        %v1408 = vpop.permute.xlu0 %1407
        %1409 = vrot.lane.b32.xlu0 %v1366, 127
        %v1410 = vpop.permute.xlu0 %1409
        %1411 = vrot.lane.b32.xlu0 %v1367, 127
        %v1412 = vpop.permute.xlu0 %1411
        %1413 = vrot.lane.b32.xlu0 %v1368, 127
        %v1414 = vpop.permute.xlu0 %1413
        %1415 = vrot.lane.b32.xlu0 %v1369, 127
        %v1416 = vpop.permute.xlu0 %1415
        %1417 = vrot.lane.b32.xlu0 %v1370, 127
        %v1418 = vpop.permute.xlu0 %1417
        %1419 = vrot.lane.b32.xlu0 %v1371, 127
        %v1420 = vpop.permute.xlu0 %1419
        %v1437 = vmul.f32 %v730, %v1390
        %v1438 = vmul.f32 %v731, %v1392
        %v1439 = vmul.f32 %v732, %v1394
        %v1440 = vmul.f32 %v733, %v1396
        %v1441 = vmul.f32 %v734, %v1398
        %v1442 = vmul.f32 %v735, %v1400
        %v1443 = vmul.f32 %v736, %v1402
        %v1444 = vmul.f32 %v737, %v1404
        %v1445 = vmul.f32 %v738, %v1406
        %v1446 = vmul.f32 %v739, %v1408
        %v1447 = vmul.f32 %v740, %v1410
        %v1448 = vmul.f32 %v741, %v1412
        %v1449 = vmul.f32 %v742, %v1414
        %v1450 = vmul.f32 %v743, %v1416
        %v1451 = vmul.f32 %v744, %v1418
        %v1452 = vmul.f32 %v745, %v1420
        %1469 = vrot.lane.b32.xlu0 %v1437, 127
        %v1470 = vpop.permute.xlu0 %1469
        %1471 = vrot.lane.b32.xlu0 %v1438, 127
        %v1472 = vpop.permute.xlu0 %1471
        %1473 = vrot.lane.b32.xlu0 %v1439, 127
        %v1474 = vpop.permute.xlu0 %1473
        %1475 = vrot.lane.b32.xlu0 %v1440, 127
        %v1476 = vpop.permute.xlu0 %1475
        %1477 = vrot.lane.b32.xlu0 %v1441, 127
        %v1478 = vpop.permute.xlu0 %1477
        %1479 = vrot.lane.b32.xlu0 %v1442, 127
        %v1480 = vpop.permute.xlu0 %1479
        %1481 = vrot.lane.b32.xlu0 %v1443, 127
        %v1482 = vpop.permute.xlu0 %1481
        %1483 = vrot.lane.b32.xlu0 %v1444, 127
        %v1484 = vpop.permute.xlu0 %1483
        %1485 = vrot.lane.b32.xlu0 %v1445, 127
        %v1486 = vpop.permute.xlu0 %1485
        %1487 = vrot.lane.b32.xlu0 %v1446, 127
        %v1488 = vpop.permute.xlu0 %1487
        %1489 = vrot.lane.b32.xlu0 %v1447, 127
        %v1490 = vpop.permute.xlu0 %1489
        %1491 = vrot.lane.b32.xlu0 %v1448, 127
        %v1492 = vpop.permute.xlu0 %1491
        %1493 = vrot.lane.b32.xlu0 %v1449, 127
        %v1494 = vpop.permute.xlu0 %1493
        %1495 = vrot.lane.b32.xlu0 %v1450, 127
        %v1496 = vpop.permute.xlu0 %1495
        %1497 = vrot.lane.b32.xlu0 %v1451, 127
        %v1498 = vpop.permute.xlu0 %1497
        %1499 = vrot.lane.b32.xlu0 %v1452, 127
        %v1500 = vpop.permute.xlu0 %1499
        %vm1517 = vcmask 7168
        %v1518 = vsel %vm1517, %v1470, 0.0
        %v1519 = vsel %vm1517, %v1472, 0.0
        %v1520 = vadd.f32 %v1518, %v1519
        %v1521 = vsel %vm1517, %v1474, 0.0
        %v1522 = vadd.f32 %v1520, %v1521
        %v1523 = vsel %vm1517, %v1476, 0.0
        %v1524 = vadd.f32 %v1522, %v1523
        %v1525 = vsel %vm1517, %v1478, 0.0
        %v1526 = vadd.f32 %v1524, %v1525
        %v1527 = vsel %vm1517, %v1480, 0.0
        %v1528 = vadd.f32 %v1526, %v1527
        %v1529 = vsel %vm1517, %v1482, 0.0
        %v1530 = vadd.f32 %v1528, %v1529
        %v1531 = vsel %vm1517, %v1484, 0.0
        %v1532 = vadd.f32 %v1530, %v1531
        %v1533 = vsel %vm1517, %v1486, 0.0
        %v1534 = vadd.f32 %v1532, %v1533
        %v1535 = vsel %vm1517, %v1488, 0.0
        %v1536 = vadd.f32 %v1534, %v1535
        %v1537 = vsel %vm1517, %v1490, 0.0
        %v1538 = vadd.f32 %v1536, %v1537
        %v1539 = vsel %vm1517, %v1492, 0.0
        %v1540 = vadd.f32 %v1538, %v1539
        %v1541 = vsel %vm1517, %v1494, 0.0
        %v1542 = vadd.f32 %v1540, %v1541
        %v1543 = vsel %vm1517, %v1496, 0.0
        %v1544 = vadd.f32 %v1542, %v1543
        %v1545 = vsel %vm1517, %v1498, 0.0
        %v1546 = vadd.f32 %v1544, %v1545
        %v1547 = vsel %vm1517, %v1500, 0.0
        %v1548 = vadd.f32 %v1546, %v1547
        %1549 = vadd.xlane.f32.xlu0 %v1548
        %v1550 = vpop.xlane.xlu0 %1549
        %v1551 = vrot.slane %v1550, 4
        %v1552 = vadd.f32 %v1550, %v1551
        %v1553 = vrot.slane %v1552, 2
        %v1554 = vadd.f32 %v1552, %v1553
        %v1555 = vrot.slane %v1554, 1
        %v1556 = vadd.f32 %v1554, %v1555
        %s1557 = vtos %v1556
        %v1558 = vstv %s1557
        %v1559 = vadd.f32 %v1372, %v1558
        %1560 = vst [vmem:[%s310] sm:$0xff] %v1559
        %s1561 = sand.u32 %s148, 1
        %s1562 = scalar_lea.sflag [#allocation5], %s1561
        %s1563 = sand.u32 %s148, 1
        %s1564 = smul.addr %s1563, 8
        %s1565 = scalar_lea.vmem [#allocation4], %s1564
        %s1566 = sand.u32 %s24, 1
        %s1567 = scalar_lea.sflag [#allocation7], %s1566
        %s1568 = sand.u32 %s174, 1
        %s1569 = smul.addr %s1568, 8
        %s1570 = scalar_lea.vmem [#allocation6], %s1569
        %s1571 = sand.u32 %s24, 1
        %s1572 = scalar_lea.sflag [#allocation7], %s1571
        %s1573 = sand.u32 %s200, 1
        %s1574 = smul.addr %s1573, 8
        %s1575 = scalar_lea.vmem [#allocation8], %s1574
        // Predicated region
        $region41: #{tpu_custom_call.1} parent=35 // pred_check
          %p1576 = pneg %p158
        $region42: #{tpu_custom_call.1} parent=35 // pred_check_branch
          %1578 = sbr.rel (%p1576) target = $region44
        $region43: #{tpu_custom_call.1} parent=35 // pred_region
          %1580 = vsyncadd %s1562, 0
          %s1581 = smul.addr %s28, 8
          %s1582 = scalar_lea.hbm %s4, %s1581
          %s1584 = sshll.u32 %s1565, 4
          %s1585 = int_to_ptr.vmem [resolvable:$true] %s1584
          %s1586 = sshll.u32 %s1582, 4
          %s1587 = int_to_ptr.hbm [resolvable:$true] %s1586
          %1589 = dma.vmem_to_hbm [thread:$0]  %s1585, 128, %s1587, %s1562
        $region44: #{tpu_custom_call.1} parent=35 // pred_fallthru
          _
        // Predicated region
        $region45: #{tpu_custom_call.1} parent=35 // pred_check
          %p1590 = pneg %p184
        $region46: #{tpu_custom_call.1} parent=35 // pred_check_branch
          %1592 = sbr.rel (%p1590) target = $region48
        $region47: #{tpu_custom_call.1} parent=35 // pred_region
          %1594 = vsyncadd %s1567, 0
          %s1595 = smul.addr %s28, 8
          %s1596 = scalar_lea.hbm %s5, %s1595
          %s1598 = sshll.u32 %s1570, 4
          %s1599 = int_to_ptr.vmem [resolvable:$true] %s1598
          %s1600 = sshll.u32 %s1596, 4
          %s1601 = int_to_ptr.hbm [resolvable:$true] %s1600
          %1603 = dma.vmem_to_hbm [thread:$0]  %s1599, 128, %s1601, %s1567
        $region48: #{tpu_custom_call.1} parent=35 // pred_fallthru
          _
        // Predicated region
        $region49: #{tpu_custom_call.1} parent=35 // pred_check
          %p1604 = pneg %p210
        $region50: #{tpu_custom_call.1} parent=35 // pred_check_branch
          %1606 = sbr.rel (%p1604) target = $region52
        $region51: #{tpu_custom_call.1} parent=35 // pred_region
          %1608 = vsyncadd %s1572, 0
          %s1609 = smul.addr %s28, 8
          %s1610 = scalar_lea.hbm %s6, %s1609
          %s1612 = sshll.u32 %s1575, 4
          %s1613 = int_to_ptr.vmem [resolvable:$true] %s1612
          %s1614 = sshll.u32 %s1610, 4
          %s1615 = int_to_ptr.hbm [resolvable:$true] %s1614
          %1617 = dma.vmem_to_hbm [thread:$0]  %s1613, 128, %s1615, %s1572
        $region52: #{tpu_custom_call.1} parent=35 // pred_fallthru
          _
      $region36: #{tpu_custom_call.1} parent=5 // pred_fallthru
        _
      %p1618 = scmp.le.s32.totalorder 2, %s19
      // Predicated region
      $region53: #{tpu_custom_call.1} parent=5 // pred_check
        %p1619 = pneg %p1618
      $region54: #{tpu_custom_call.1} parent=5 // pred_check_branch
        %1621 = sbr.rel (%p1619) target = $region56
      $region55: #{tpu_custom_call.1} parent=5 // pred_region
        %s1622 = ssub.s32 %s19, 2
        // Predicated region
        $region57: #{tpu_custom_call.1} parent=55 // pred_check
          %p1623 = pneg %p164
        $region58: #{tpu_custom_call.1} parent=55 // pred_check_branch
          %1625 = sbr.rel (%p1623) target = $region60
        $region59: #{tpu_custom_call.1} parent=55 // pred_region
          %s1626 = sand.u32 %s149, 1
          %s1627 = scalar_lea.sflag [#allocation5], %s1626
          %s1628 = sand.u32 %s149, 1
          %s1629 = smul.addr %s1628, 8
          %s1630 = scalar_lea.vmem [#allocation4], %s1629
          %1632 = dma.done %s1627, 128
        $region60: #{tpu_custom_call.1} parent=55 // pred_fallthru
          _
        // Predicated region
        $region61: #{tpu_custom_call.1} parent=55 // pred_check
          %p1633 = pneg %p190
        $region62: #{tpu_custom_call.1} parent=55 // pred_check_branch
          %1635 = sbr.rel (%p1633) target = $region64
        $region63: #{tpu_custom_call.1} parent=55 // pred_region
          %s1636 = sand.u32 %s25, 1
          %s1637 = scalar_lea.sflag [#allocation7], %s1636
          %s1638 = sand.u32 %s175, 1
          %s1639 = smul.addr %s1638, 8
          %s1640 = scalar_lea.vmem [#allocation6], %s1639
          %1642 = dma.done %s1637, 128
        $region64: #{tpu_custom_call.1} parent=55 // pred_fallthru
          _
        // Predicated region
        $region65: #{tpu_custom_call.1} parent=55 // pred_check
          %p1643 = pneg %p216
        $region66: #{tpu_custom_call.1} parent=55 // pred_check_branch
          %1645 = sbr.rel (%p1643) target = $region68
        $region67: #{tpu_custom_call.1} parent=55 // pred_region
          %s1646 = sand.u32 %s25, 1
          %s1647 = scalar_lea.sflag [#allocation7], %s1646
          %s1648 = sand.u32 %s201, 1
          %s1649 = smul.addr %s1648, 8
          %s1650 = scalar_lea.vmem [#allocation8], %s1649
          %1652 = dma.done %s1647, 128
        $region68: #{tpu_custom_call.1} parent=55 // pred_fallthru
          _
      $region56: #{tpu_custom_call.1} parent=5 // pred_fallthru
        _
    $region6: #{tpu_custom_call.1} parent=1 // loop_footer
      %s23 = sadd.s32 1, %s19
    $region7: #{tpu_custom_call.1} parent=1 // loop_footer_branch
      %18 = sbr.rel target = $region3
    $region8: #{tpu_custom_call.1} parent=1 // loop_exit
      _
    %1653 = vsyncpa [#allocation5], 1
    %s1654 = scalar_lea.sflag [#allocation5], 1
    %1655 = vsyncpa %s1654, 1
    %1656 = vsyncpa [#allocation7], 1
    %s1657 = scalar_lea.sflag [#allocation7], 1
    %1658 = vsyncpa %s1657, 1

</llo_original>
